<compile_context>
chip_gen: v7x
topology: tpu7x:2x2x1
jax: 0.10.0
libtpu: 0.0.40
codegen_flags: <defaults>
</compile_context>

<pallas_src>
import functools

import jax
import jax.numpy as jnp
import numpy as np
from jax import lax
from jax.experimental import pallas as pl
from jax.experimental.pallas import tpu as pltpu


def _cbam_kernel(x_ref, w1t_ref, w2t_ref, wsp_ref, mask_ref, o_ref, *, W):
    # x_ref   : (Bt, C, HW) VMEM tile (HW = H*W, lane-dense)
    # w1t_ref : (C, Cr)  first 1x1-conv weight of the shared MLP, pre-transposed
    # w2t_ref : (Cr, C)  second 1x1-conv weight of the shared MLP, pre-transposed
    # wsp_ref : SMEM (18,) flattened 3x3 spatial conv weight (OIHW, O=1, I=2)
    # mask_ref: (9, HW)  per-tap validity masks for the flattened 3x3 conv
    # o_ref   : (Bt, C, HW) output tile
    Bt, C, HW = x_ref.shape

    x = x_ref[...].astype(jnp.float32)                       # (Bt, C, HW)

    # ---------------- channel attention (batched over the whole tile) --------
    avg_c = jnp.mean(x, axis=2)                              # (Bt, C)
    max_c = jnp.max(x, axis=2)                               # (Bt, C)
    pooled = jnp.concatenate([avg_c, max_c], axis=0)         # (2*Bt, C)

    w1t = w1t_ref[...].astype(jnp.float32)                   # (C, Cr)
    w2t = w2t_ref[...].astype(jnp.float32)                   # (Cr, C)

    h = jnp.maximum(
        jnp.dot(pooled, w1t, preferred_element_type=jnp.float32), 0.0)  # (2Bt, Cr)
    h = h[:Bt] + h[Bt:]        # fuse avg/max branches (linear after the ReLU)
    ca = jax.nn.sigmoid(
        jnp.dot(h, w2t, preferred_element_type=jnp.float32))            # (Bt, C)

    x1 = x * ca[:, :, None]                                  # channel-recalibrated

    # ---------------- spatial attention ----------------
    avg_p = jnp.mean(x1, axis=1)                             # (Bt, HW)
    max_p = jnp.max(x1, axis=1)                              # (Bt, HW)
    masks = mask_ref[...]                                    # (9, HW)

    # 3x3 'SAME' conv on the flattened planes: 9 taps via circular lane rolls,
    # each masked by a host-precomputed validity mask (handles both the
    # row-boundary wrap and the top/bottom circular wrap).
    conv = jnp.zeros((Bt, HW), jnp.float32)
    for tap in range(9):
        dh, dw = tap // 3, tap % 3
        s = (dh - 1) * W + (dw - 1)                          # flat tap offset
        shift = (-s) % HW                                    # roll so tap[p] = plane[p + s]
        if shift:
            ra = pltpu.roll(avg_p, shift=shift, axis=1)
            rm = pltpu.roll(max_p, shift=shift, axis=1)
        else:
            ra, rm = avg_p, max_p
        m = masks[tap:tap + 1, :]                            # (1, HW)
        conv = conv + m * (wsp_ref[tap] * ra + wsp_ref[9 + tap] * rm)
    sa = jax.nn.sigmoid(conv)                                # (Bt, HW)

    # ---------------- single fused output write: x * ca * sa -----------------
    o_ref[...] = (x1 * sa[:, None, :]).astype(o_ref.dtype)


def _num_tensorcores():
    """1 for single-TC inference chips (v5e/v6e); 2 for v7x-style chips."""
    try:
        kind = jax.devices()[0].device_kind.lower()
    except Exception:
        return 1
    return 2 if ("v7" in kind or "7x" in kind) else 1


def _pick_bt(batch, bytes_per_image, num_cores):
    """Images per grid step: one grid step per TensorCore when VMEM allows."""
    budget = 2 << 20          # per-block budget; double-buffered in+out stays small
    max_bt = max(1, budget // max(1, bytes_per_image))
    divisors = [d for d in range(1, batch + 1) if batch % d == 0]
    fitting = [d for d in divisors if d <= max_bt] or [1]
    pref = [d for d in fitting if batch // d >= num_cores]
    return pref[-1] if pref else fitting[-1]


def cbam_forward(x, w1, w2, w_spatial):
    """CBAM forward. x: (B, C, H, W); w1: (Cr, C); w2: (C, Cr); w_spatial: (1,2,3,3)."""
    B, C, H, W = x.shape
    Cr = w1.shape[0]
    HW = H * W

    Bt = _pick_bt(B, C * HW * 4, _num_tensorcores())

    x_flat = x.reshape(B, C, HW)                             # lane-dense layout
    w1_t = jnp.transpose(w1).astype(jnp.float32)             # (C, Cr)
    w2_t = jnp.transpose(w2).astype(jnp.float32)             # (Cr, C)
    wsp_flat = w_spatial.reshape(-1).astype(jnp.float32)     # (18,) scalars -> SMEM

    # Per-tap validity masks for the flattened 3x3 conv: position (h, w) is
    # valid for tap (dh, dw) iff 0 <= h+dh-1 < H and 0 <= w+dw-1 < W.
    hh, ww = np.meshgrid(np.arange(H), np.arange(W), indexing="ij")
    masks_np = np.stack(
        [(((hh + dh - 1) >= 0) & ((hh + dh - 1) < H) &
          ((ww + dw - 1) >= 0) & ((ww + dw - 1) < W)).reshape(-1)
         for dh in range(3) for dw in range(3)],
        axis=0).astype(np.float32)                           # (9, HW)
    masks = jnp.asarray(masks_np)

    kernel = functools.partial(_cbam_kernel, W=W)

    out_flat = pl.pallas_call(
        kernel,
        out_shape=jax.ShapeDtypeStruct((B, C, HW), x.dtype),
        grid_spec=pltpu.PrefetchScalarGridSpec(
            num_scalar_prefetch=0,
            grid=(B // Bt,),
            in_specs=[
                pl.BlockSpec((Bt, C, HW), lambda g: (g, 0, 0)),        # x (flat)
                pl.BlockSpec((C, Cr), lambda g: (0, 0)),               # w1^T
                pl.BlockSpec((Cr, C), lambda g: (0, 0)),               # w2^T
                pl.BlockSpec(memory_space=pltpu.MemorySpace.SMEM),     # spatial w
                pl.BlockSpec((9, HW), lambda g: (0, 0)),               # tap masks
            ],
            out_specs=pl.BlockSpec((Bt, C, HW), lambda g: (g, 0, 0)),
        ),
        compiler_params=pltpu.CompilerParams(
            dimension_semantics=("parallel",)),
    )(x_flat, w1_t, w2_t, wsp_flat, masks)
    return out_flat.reshape(B, C, H, W)


def cbam_ref(x, w1, w2, w_spatial):
    """Pure-JAX reference matching the PyTorch CBAM forward."""
    avg = jnp.mean(x, axis=(2, 3))                   # (B, C)
    mx = jnp.max(x, axis=(2, 3))                     # (B, C)

    def mlp(v):
        h = jax.nn.relu(jnp.matmul(v, w1.T, precision=lax.Precision.HIGHEST))
        return jnp.matmul(h, w2.T, precision=lax.Precision.HIGHEST)

    ca = jax.nn.sigmoid(mlp(avg) + mlp(mx))[:, :, None, None]
    x1 = ca * x
    avg_s = jnp.mean(x1, axis=1, keepdims=True)
    max_s = jnp.max(x1, axis=1, keepdims=True)
    cat = jnp.concatenate([avg_s, max_s], axis=1)    # (B, 2, H, W)
    conv = lax.conv_general_dilated(
        cat, w_spatial, window_strides=(1, 1), padding="SAME",
        dimension_numbers=("NCHW", "OIHW", "NCHW"),
        precision=lax.Precision.HIGHEST)
    sa = jax.nn.sigmoid(conv)
    return sa * x1


if __name__ == "__main__":
    key = jax.random.PRNGKey(0)
    k1, k2, k3, k4 = jax.random.split(key, 4)

    # CBAM(channels=32) with default reduction=16 -> hidden = 2
    B, C, H, W = 8, 32, 16, 16
    reduction = 16
    Cr = C // reduction

    x = jax.random.normal(k1, (B, C, H, W), jnp.float32)
    w1 = jax.random.normal(k2, (Cr, C), jnp.float32) * 0.1          # Conv2d(C, Cr, 1)
    w2 = jax.random.normal(k3, (C, Cr), jnp.float32) * 0.1          # Conv2d(Cr, C, 1)
    w_spatial = jax.random.normal(k4, (1, 2, 3, 3), jnp.float32) * 0.1  # Conv2d(2,1,3)

    out = cbam_forward(x, w1, w2, w_spatial)
    out = jax.block_until_ready(out)

    ref = cbam_ref(x, w1, w2, w_spatial)
    np.testing.assert_allclose(np.asarray(out), np.asarray(ref),
                               rtol=1e-3, atol=1e-3)
    print("KERNEL_OK")
</pallas_src>

<mosaic_0001>
module attributes {stable_mosaic.version = 11 : i64} {
  func.func @_cbam_kernel(%arg0: i32, %arg1: memref<8x32x256xf32, #tpu.memory_space<vmem>>, %arg2: memref<32x2xf32, #tpu.memory_space<vmem>>, %arg3: memref<2x32xf32, #tpu.memory_space<vmem>>, %arg4: memref<18xf32, #tpu.memory_space<smem>>, %arg5: memref<9x256xf32, #tpu.memory_space<vmem>>, %arg6: memref<8x32x256xf32, #tpu.memory_space<vmem>>) attributes {dimension_semantics = [#tpu.dimension_semantics<parallel>], iteration_bounds = array<i64: 1>, scalar_prefetch = 0 : i64, scratch_operands = 0 : i64, tpu.core_type = #tpu.core_type<tc>, window_params = [{transform_indices = @transform_0, window_bounds = array<i64: 8, 32, 256>}, {pipeline_mode = #tpu.pipeline_mode<synchronous>, transform_indices = @transform_1, window_bounds = array<i64: 32, 2>}, {pipeline_mode = #tpu.pipeline_mode<synchronous>, transform_indices = @transform_2, window_bounds = array<i64: 2, 32>}, {transform_indices = @transform_3, window_bounds = array<i64: 18>}, {pipeline_mode = #tpu.pipeline_mode<synchronous>, transform_indices = @transform_4, window_bounds = array<i64: 9, 256>}, {transform_indices = @transform_5, window_bounds = array<i64: 8, 32, 256>}]} {
    %c0 = arith.constant 0 : index
    %c0_0 = arith.constant 0 : index
    %c0_1 = arith.constant 0 : index
    %0 = vector.load %arg1[%c0, %c0_0, %c0_1] : memref<8x32x256xf32, #tpu.memory_space<vmem>>, vector<8x32x256xf32>
    %cst = arith.constant dense<0.000000e+00> : vector<8x32xf32>
    %1 = vector.multi_reduction <add>, %0, %cst [2] : vector<8x32x256xf32> to vector<8x32xf32>
    %cst_2 = arith.constant 2.560000e+02 : f32
    %2 = vector.broadcast %cst_2 : f32 to vector<8x32xf32>
    %3 = arith.divf %1, %2 : vector<8x32xf32>
    %cst_3 = arith.constant dense<0xFF800000> : vector<8x32xf32>
    %4 = vector.multi_reduction <maximumf>, %0, %cst_3 [2] : vector<8x32x256xf32> to vector<8x32xf32>
    %5 = tpu.concatenate %3, %4 in 0 : vector<8x32xf32>, vector<8x32xf32> -> vector<16x32xf32>
    %c0_4 = arith.constant 0 : index
    %c0_5 = arith.constant 0 : index
    %6 = vector.load %arg2[%c0_4, %c0_5] : memref<32x2xf32, #tpu.memory_space<vmem>>, vector<32x2xf32>
    %c0_6 = arith.constant 0 : index
    %c0_7 = arith.constant 0 : index
    %7 = vector.load %arg3[%c0_6, %c0_7] : memref<2x32xf32, #tpu.memory_space<vmem>>, vector<2x32xf32>
    %cst_8 = arith.constant dense<0.000000e+00> : vector<16x2xf32>
    %8 = tpu.matmul %5, %6, %cst_8 {dimension_numbers = #tpu.dot_dimension_numbers<[1], [0], [0], [1], [0, 0, 1, 1], [], []>} : vector<16x32xf32>, vector<32x2xf32>, vector<16x2xf32> -> vector<16x2xf32>
    %cst_9 = arith.constant 0.000000e+00 : f32
    %9 = vector.broadcast %cst_9 : f32 to vector<16x2xf32>
    %10 = arith.maximumf %8, %9 : vector<16x2xf32>
    %11 = vector.extract_strided_slice %10 {offsets = [0, 0], sizes = [8, 2], strides = [1, 1]} : vector<16x2xf32> to vector<8x2xf32>
    %12 = vector.extract_strided_slice %10 {offsets = [8, 0], sizes = [8, 2], strides = [1, 1]} : vector<16x2xf32> to vector<8x2xf32>
    %13 = arith.addf %11, %12 : vector<8x2xf32>
    %cst_10 = arith.constant dense<0.000000e+00> : vector<8x32xf32>
    %14 = tpu.matmul %13, %7, %cst_10 {dimension_numbers = #tpu.dot_dimension_numbers<[1], [0], [0], [1], [0, 0, 1, 1], [], []>} : vector<8x2xf32>, vector<2x32xf32>, vector<8x32xf32> -> vector<8x32xf32>
    %15 = arith.negf %14 : vector<8x32xf32>
    %16 = math.exp %15 : vector<8x32xf32>
    %cst_11 = arith.constant 1.000000e+00 : f32
    %17 = vector.broadcast %cst_11 : f32 to vector<8x32xf32>
    %18 = arith.addf %17, %16 : vector<8x32xf32>
    %19 = arith.divf %17, %18 : vector<8x32xf32>
    %20 = vector.shape_cast %19 : vector<8x32xf32> to vector<8x32x1xf32>
    %21 = vector.broadcast %20 : vector<8x32x1xf32> to vector<8x32x256xf32>
    %22 = arith.mulf %0, %21 : vector<8x32x256xf32>
    %cst_12 = arith.constant dense<0.000000e+00> : vector<8x256xf32>
    %23 = vector.multi_reduction <add>, %22, %cst_12 [1] : vector<8x32x256xf32> to vector<8x256xf32>
    %cst_13 = arith.constant 3.200000e+01 : f32
    %24 = vector.broadcast %cst_13 : f32 to vector<8x256xf32>
    %25 = arith.divf %23, %24 : vector<8x256xf32>
    %cst_14 = arith.constant dense<0xFF800000> : vector<8x256xf32>
    %26 = vector.multi_reduction <maximumf>, %22, %cst_14 [1] : vector<8x32x256xf32> to vector<8x256xf32>
    %c0_15 = arith.constant 0 : index
    %c0_16 = arith.constant 0 : index
    %27 = vector.load %arg5[%c0_15, %c0_16] : memref<9x256xf32, #tpu.memory_space<vmem>>, vector<9x256xf32>
    %cst_17 = arith.constant 0.000000e+00 : f32
    %28 = vector.broadcast %cst_17 : f32 to vector<8x256xf32>
    %c17_i32 = arith.constant 17 : i32
    %29 = tpu.dynamic_rotate %25 by %c17_i32 dim 1 : vector<8x256xf32>, i32 -> vector<8x256xf32>
    %c17_i32_18 = arith.constant 17 : i32
    %30 = tpu.dynamic_rotate %26 by %c17_i32_18 dim 1 : vector<8x256xf32>, i32 -> vector<8x256xf32>
    %31 = vector.extract_strided_slice %27 {offsets = [0, 0], sizes = [1, 256], strides = [1, 1]} : vector<9x256xf32> to vector<1x256xf32>
    %c0_19 = arith.constant 0 : index
    %32 = memref.load %arg4[%c0_19] : memref<18xf32, #tpu.memory_space<smem>>
    %33 = vector.broadcast %32 : f32 to vector<8x256xf32>
    %34 = arith.mulf %33, %29 : vector<8x256xf32>
    %c9 = arith.constant 9 : index
    %35 = memref.load %arg4[%c9] : memref<18xf32, #tpu.memory_space<smem>>
    %36 = vector.broadcast %35 : f32 to vector<8x256xf32>
    %37 = arith.mulf %36, %30 : vector<8x256xf32>
    %38 = arith.addf %34, %37 : vector<8x256xf32>
    %39 = vector.broadcast %31 : vector<1x256xf32> to vector<8x256xf32>
    %40 = arith.mulf %39, %38 : vector<8x256xf32>
    %41 = arith.addf %28, %40 : vector<8x256xf32>
    %c16_i32 = arith.constant 16 : i32
    %42 = tpu.dynamic_rotate %25 by %c16_i32 dim 1 : vector<8x256xf32>, i32 -> vector<8x256xf32>
    %c16_i32_20 = arith.constant 16 : i32
    %43 = tpu.dynamic_rotate %26 by %c16_i32_20 dim 1 : vector<8x256xf32>, i32 -> vector<8x256xf32>
    %44 = vector.extract_strided_slice %27 {offsets = [1, 0], sizes = [1, 256], strides = [1, 1]} : vector<9x256xf32> to vector<1x256xf32>
    %c1 = arith.constant 1 : index
    %45 = memref.load %arg4[%c1] : memref<18xf32, #tpu.memory_space<smem>>
    %46 = vector.broadcast %45 : f32 to vector<8x256xf32>
    %47 = arith.mulf %46, %42 : vector<8x256xf32>
    %c10 = arith.constant 10 : index
    %48 = memref.load %arg4[%c10] : memref<18xf32, #tpu.memory_space<smem>>
    %49 = vector.broadcast %48 : f32 to vector<8x256xf32>
    %50 = arith.mulf %49, %43 : vector<8x256xf32>
    %51 = arith.addf %47, %50 : vector<8x256xf32>
    %52 = vector.broadcast %44 : vector<1x256xf32> to vector<8x256xf32>
    %53 = arith.mulf %52, %51 : vector<8x256xf32>
    %54 = arith.addf %41, %53 : vector<8x256xf32>
    %c15_i32 = arith.constant 15 : i32
    %55 = tpu.dynamic_rotate %25 by %c15_i32 dim 1 : vector<8x256xf32>, i32 -> vector<8x256xf32>
    %c15_i32_21 = arith.constant 15 : i32
    %56 = tpu.dynamic_rotate %26 by %c15_i32_21 dim 1 : vector<8x256xf32>, i32 -> vector<8x256xf32>
    %57 = vector.extract_strided_slice %27 {offsets = [2, 0], sizes = [1, 256], strides = [1, 1]} : vector<9x256xf32> to vector<1x256xf32>
    %c2 = arith.constant 2 : index
    %58 = memref.load %arg4[%c2] : memref<18xf32, #tpu.memory_space<smem>>
    %59 = vector.broadcast %58 : f32 to vector<8x256xf32>
    %60 = arith.mulf %59, %55 : vector<8x256xf32>
    %c11 = arith.constant 11 : index
    %61 = memref.load %arg4[%c11] : memref<18xf32, #tpu.memory_space<smem>>
    %62 = vector.broadcast %61 : f32 to vector<8x256xf32>
    %63 = arith.mulf %62, %56 : vector<8x256xf32>
    %64 = arith.addf %60, %63 : vector<8x256xf32>
    %65 = vector.broadcast %57 : vector<1x256xf32> to vector<8x256xf32>
    %66 = arith.mulf %65, %64 : vector<8x256xf32>
    %67 = arith.addf %54, %66 : vector<8x256xf32>
    %c1_i32 = arith.constant 1 : i32
    %68 = tpu.dynamic_rotate %25 by %c1_i32 dim 1 : vector<8x256xf32>, i32 -> vector<8x256xf32>
    %c1_i32_22 = arith.constant 1 : i32
    %69 = tpu.dynamic_rotate %26 by %c1_i32_22 dim 1 : vector<8x256xf32>, i32 -> vector<8x256xf32>
    %70 = vector.extract_strided_slice %27 {offsets = [3, 0], sizes = [1, 256], strides = [1, 1]} : vector<9x256xf32> to vector<1x256xf32>
    %c3 = arith.constant 3 : index
    %71 = memref.load %arg4[%c3] : memref<18xf32, #tpu.memory_space<smem>>
    %72 = vector.broadcast %71 : f32 to vector<8x256xf32>
    %73 = arith.mulf %72, %68 : vector<8x256xf32>
    %c12 = arith.constant 12 : index
    %74 = memref.load %arg4[%c12] : memref<18xf32, #tpu.memory_space<smem>>
    %75 = vector.broadcast %74 : f32 to vector<8x256xf32>
    %76 = arith.mulf %75, %69 : vector<8x256xf32>
    %77 = arith.addf %73, %76 : vector<8x256xf32>
    %78 = vector.broadcast %70 : vector<1x256xf32> to vector<8x256xf32>
    %79 = arith.mulf %78, %77 : vector<8x256xf32>
    %80 = arith.addf %67, %79 : vector<8x256xf32>
    %81 = vector.extract_strided_slice %27 {offsets = [4, 0], sizes = [1, 256], strides = [1, 1]} : vector<9x256xf32> to vector<1x256xf32>
    %c4 = arith.constant 4 : index
    %82 = memref.load %arg4[%c4] : memref<18xf32, #tpu.memory_space<smem>>
    %83 = vector.broadcast %82 : f32 to vector<8x256xf32>
    %84 = arith.mulf %83, %25 : vector<8x256xf32>
    %c13 = arith.constant 13 : index
    %85 = memref.load %arg4[%c13] : memref<18xf32, #tpu.memory_space<smem>>
    %86 = vector.broadcast %85 : f32 to vector<8x256xf32>
    %87 = arith.mulf %86, %26 : vector<8x256xf32>
    %88 = arith.addf %84, %87 : vector<8x256xf32>
    %89 = vector.broadcast %81 : vector<1x256xf32> to vector<8x256xf32>
    %90 = arith.mulf %89, %88 : vector<8x256xf32>
    %91 = arith.addf %80, %90 : vector<8x256xf32>
    %c255_i32 = arith.constant 255 : i32
    %92 = tpu.dynamic_rotate %25 by %c255_i32 dim 1 : vector<8x256xf32>, i32 -> vector<8x256xf32>
    %c255_i32_23 = arith.constant 255 : i32
    %93 = tpu.dynamic_rotate %26 by %c255_i32_23 dim 1 : vector<8x256xf32>, i32 -> vector<8x256xf32>
    %94 = vector.extract_strided_slice %27 {offsets = [5, 0], sizes = [1, 256], strides = [1, 1]} : vector<9x256xf32> to vector<1x256xf32>
    %c5 = arith.constant 5 : index
    %95 = memref.load %arg4[%c5] : memref<18xf32, #tpu.memory_space<smem>>
    %96 = vector.broadcast %95 : f32 to vector<8x256xf32>
    %97 = arith.mulf %96, %92 : vector<8x256xf32>
    %c14 = arith.constant 14 : index
    %98 = memref.load %arg4[%c14] : memref<18xf32, #tpu.memory_space<smem>>
    %99 = vector.broadcast %98 : f32 to vector<8x256xf32>
    %100 = arith.mulf %99, %93 : vector<8x256xf32>
    %101 = arith.addf %97, %100 : vector<8x256xf32>
    %102 = vector.broadcast %94 : vector<1x256xf32> to vector<8x256xf32>
    %103 = arith.mulf %102, %101 : vector<8x256xf32>
    %104 = arith.addf %91, %103 : vector<8x256xf32>
    %c241_i32 = arith.constant 241 : i32
    %105 = tpu.dynamic_rotate %25 by %c241_i32 dim 1 : vector<8x256xf32>, i32 -> vector<8x256xf32>
    %c241_i32_24 = arith.constant 241 : i32
    %106 = tpu.dynamic_rotate %26 by %c241_i32_24 dim 1 : vector<8x256xf32>, i32 -> vector<8x256xf32>
    %107 = vector.extract_strided_slice %27 {offsets = [6, 0], sizes = [1, 256], strides = [1, 1]} : vector<9x256xf32> to vector<1x256xf32>
    %c6 = arith.constant 6 : index
    %108 = memref.load %arg4[%c6] : memref<18xf32, #tpu.memory_space<smem>>
    %109 = vector.broadcast %108 : f32 to vector<8x256xf32>
    %110 = arith.mulf %109, %105 : vector<8x256xf32>
    %c15 = arith.constant 15 : index
    %111 = memref.load %arg4[%c15] : memref<18xf32, #tpu.memory_space<smem>>
    %112 = vector.broadcast %111 : f32 to vector<8x256xf32>
    %113 = arith.mulf %112, %106 : vector<8x256xf32>
    %114 = arith.addf %110, %113 : vector<8x256xf32>
    %115 = vector.broadcast %107 : vector<1x256xf32> to vector<8x256xf32>
    %116 = arith.mulf %115, %114 : vector<8x256xf32>
    %117 = arith.addf %104, %116 : vector<8x256xf32>
    %c240_i32 = arith.constant 240 : i32
    %118 = tpu.dynamic_rotate %25 by %c240_i32 dim 1 : vector<8x256xf32>, i32 -> vector<8x256xf32>
    %c240_i32_25 = arith.constant 240 : i32
    %119 = tpu.dynamic_rotate %26 by %c240_i32_25 dim 1 : vector<8x256xf32>, i32 -> vector<8x256xf32>
    %120 = vector.extract_strided_slice %27 {offsets = [7, 0], sizes = [1, 256], strides = [1, 1]} : vector<9x256xf32> to vector<1x256xf32>
    %c7 = arith.constant 7 : index
    %121 = memref.load %arg4[%c7] : memref<18xf32, #tpu.memory_space<smem>>
    %122 = vector.broadcast %121 : f32 to vector<8x256xf32>
    %123 = arith.mulf %122, %118 : vector<8x256xf32>
    %c16 = arith.constant 16 : index
    %124 = memref.load %arg4[%c16] : memref<18xf32, #tpu.memory_space<smem>>
    %125 = vector.broadcast %124 : f32 to vector<8x256xf32>
    %126 = arith.mulf %125, %119 : vector<8x256xf32>
    %127 = arith.addf %123, %126 : vector<8x256xf32>
    %128 = vector.broadcast %120 : vector<1x256xf32> to vector<8x256xf32>
    %129 = arith.mulf %128, %127 : vector<8x256xf32>
    %130 = arith.addf %117, %129 : vector<8x256xf32>
    %c239_i32 = arith.constant 239 : i32
    %131 = tpu.dynamic_rotate %25 by %c239_i32 dim 1 : vector<8x256xf32>, i32 -> vector<8x256xf32>
    %c239_i32_26 = arith.constant 239 : i32
    %132 = tpu.dynamic_rotate %26 by %c239_i32_26 dim 1 : vector<8x256xf32>, i32 -> vector<8x256xf32>
    %133 = vector.extract_strided_slice %27 {offsets = [8, 0], sizes = [1, 256], strides = [1, 1]} : vector<9x256xf32> to vector<1x256xf32>
    %c8 = arith.constant 8 : index
    %134 = memref.load %arg4[%c8] : memref<18xf32, #tpu.memory_space<smem>>
    %135 = vector.broadcast %134 : f32 to vector<8x256xf32>
    %136 = arith.mulf %135, %131 : vector<8x256xf32>
    %c17 = arith.constant 17 : index
    %137 = memref.load %arg4[%c17] : memref<18xf32, #tpu.memory_space<smem>>
    %138 = vector.broadcast %137 : f32 to vector<8x256xf32>
    %139 = arith.mulf %138, %132 : vector<8x256xf32>
    %140 = arith.addf %136, %139 : vector<8x256xf32>
    %141 = vector.broadcast %133 : vector<1x256xf32> to vector<8x256xf32>
    %142 = arith.mulf %141, %140 : vector<8x256xf32>
    %143 = arith.addf %130, %142 : vector<8x256xf32>
    %144 = arith.negf %143 : vector<8x256xf32>
    %145 = math.exp %144 : vector<8x256xf32>
    %cst_27 = arith.constant 1.000000e+00 : f32
    %146 = vector.broadcast %cst_27 : f32 to vector<8x256xf32>
    %147 = arith.addf %146, %145 : vector<8x256xf32>
    %148 = arith.divf %146, %147 : vector<8x256xf32>
    %149 = vector.shape_cast %148 : vector<8x256xf32> to vector<8x1x256xf32>
    %150 = vector.broadcast %149 : vector<8x1x256xf32> to vector<8x32x256xf32>
    %151 = arith.mulf %22, %150 : vector<8x32x256xf32>
    %c0_28 = arith.constant 0 : index
    %c0_29 = arith.constant 0 : index
    %c0_30 = arith.constant 0 : index
    %152 = vector.load %arg6[%c0_28, %c0_29, %c0_30] : memref<8x32x256xf32, #tpu.memory_space<vmem>>, vector<8x32x256xf32>
    tpu.vector_store %arg6[%c0_28, %c0_29, %c0_30], %151 {strides = array<i32>} : memref<8x32x256xf32, #tpu.memory_space<vmem>>, vector<8x32x256xf32>,
    return
  }
  func.func @transform_0(%arg0: i32) -> (i32, i32, i32) {
    %c0_i32 = arith.constant 0 : i32
    %c0_i32_0 = arith.constant 0 : i32
    %c0_i32_1 = arith.constant 0 : i32
    return %arg0, %c0_i32, %c0_i32_0 : i32, i32, i32
  }
  func.func @transform_1(%arg0: i32) -> (i32, i32) {
    %c0_i32 = arith.constant 0 : i32
    %c0_i32_0 = arith.constant 0 : i32
    %c0_i32_1 = arith.constant 0 : i32
    return %c0_i32, %c0_i32_0 : i32, i32
  }
  func.func @transform_2(%arg0: i32) -> (i32, i32) {
    %c0_i32 = arith.constant 0 : i32
    %c0_i32_0 = arith.constant 0 : i32
    %c0_i32_1 = arith.constant 0 : i32
    return %c0_i32, %c0_i32_0 : i32, i32
  }
  func.func @transform_3(%arg0: i32) -> i32 {
    %c0_i32 = arith.constant 0 : i32
    %c0_i32_0 = arith.constant 0 : i32
    return %c0_i32 : i32
  }
  func.func @transform_4(%arg0: i32) -> (i32, i32) {
    %c0_i32 = arith.constant 0 : i32
    %c0_i32_0 = arith.constant 0 : i32
    %c0_i32_1 = arith.constant 0 : i32
    return %c0_i32, %c0_i32_0 : i32, i32
  }
  func.func @transform_5(%arg0: i32) -> (i32, i32, i32) {
    %c0_i32 = arith.constant 0 : i32
    %c0_i32_0 = arith.constant 0 : i32
    %c0_i32_1 = arith.constant 0 : i32
    return %arg0, %c0_i32, %c0_i32_0 : i32, i32, i32
  }
}

</mosaic_0001>

<llo_original>
// kernel: tpu_custom_call.1
$region0: #{tpu_custom_call.1}
  #allocation0 [shape = 'u32[]', space=smem, size = 0x4, offset = 0x4, fixed_abs, tag = 'smem constant byte address 0x4 - core index']
  #allocation1 [shape = 'u32[144,128]{1,0:T(1,128)}', space=vmem, size = 0x12000, scoped, tag = 'internal scratch']
  %s0 = inlined_call_operand.hbm [shape: f32[8,32,256], index: 0, kind: input, shape index: {}]
  %s1 = inlined_call_operand.vmem [shape: f32[32,2], index: 1, kind: input, shape index: {}]
  %s2 = inlined_call_operand.vmem [shape: f32[2,32], index: 2, kind: input, shape index: {}]
  %s3 = inlined_call_operand.vmem [shape: f32[18], index: 3, kind: input, shape index: {}]
  %s4 = inlined_call_operand.vmem [shape: f32[9,256], index: 4, kind: input, shape index: {}]
  %s5 = inlined_call_operand.hbm [shape: f32[8,32,256], index: 5, kind: output, shape index: {}]
  %s6 = sld [smem:[#allocation0]]
  $region38: #{tpu_custom_call.1} parent=0
    _
  %s8 = ssub.s32 1, %s6
  %s9 = scalar_select 0, %s8, %s6
  $region1: #{tpu_custom_call.1} parent=0
    #allocation2 [shape = 'u8[262144]{0}', space=vmem, size = 0x40000, scoped, tag = 'input window, operand 0, single buffered']
    #allocation3 [shape = 's32[1]{0}', space=sflag, size = 0x4, scoped, tag = 'scoped memory for tpu_custom_call.1']
    #allocation4 [shape = 's32[1]{0}', space=sflag, size = 0x4, scoped, tag = 'scoped memory for tpu_custom_call.1']
    #allocation5 [shape = 's32[1]{0}', space=sflag, size = 0x4, scoped, tag = 'scoped memory for tpu_custom_call.1']
    #allocation6 [shape = 'u8[512]{0}', space=smem, size = 0x200, scoped, tag = 'input window, operand 3, single buffered']
    #allocation7 [shape = 'u8[262144]{0}', space=vmem, size = 0x40000, scoped, tag = 'output window, operand 0, single buffered']
    %10 = vsyncpa [#allocation3], 0
    %11 = vsyncpa [#allocation5], 0
    %12 = vsyncpa [#allocation4], 0
    // Predicated region
    $region2: #{tpu_custom_call.1} parent=1 // pred_check
      _
    $region3: #{tpu_custom_call.1} parent=1 // pred_check_branch
      %14 = sbr.rel (0) target = $region5
    $region4: #{tpu_custom_call.1} parent=1 // pred_region
      %s16 = ssub.s32 8192, 8192
      %17 = vsyncadd [#allocation3], %s16
      %s18 = sshll.u32 [#allocation2], 4
      %s19 = int_to_ptr.vmem [resolvable:$true] %s18
      %24 = dma.hbm_to_vmem [thread:$0]  %s0, 8192, %s19, [#allocation3], 256, 256, 16
    $region5: #{tpu_custom_call.1} parent=1 // pred_fallthru
      _
    // Predicated region
    $region6: #{tpu_custom_call.1} parent=1 // pred_check
      _
    $region7: #{tpu_custom_call.1} parent=1 // pred_check_branch
      %26 = sbr.rel (0) target = $region9
    $region8: #{tpu_custom_call.1} parent=1 // pred_region
      _
    $region9: #{tpu_custom_call.1} parent=1 // pred_fallthru
      _
    // Predicated region
    $region10: #{tpu_custom_call.1} parent=1 // pred_check
      _
    $region11: #{tpu_custom_call.1} parent=1 // pred_check_branch
      %28 = sbr.rel (0) target = $region13
    $region12: #{tpu_custom_call.1} parent=1 // pred_region
      _
    $region13: #{tpu_custom_call.1} parent=1 // pred_fallthru
      _
    // Predicated region
    $region14: #{tpu_custom_call.1} parent=1 // pred_check
      _
    $region15: #{tpu_custom_call.1} parent=1 // pred_check_branch
      %30 = sbr.rel (0) target = $region17
    $region16: #{tpu_custom_call.1} parent=1 // pred_region
      %s32 = ssub.s32 16, 16
      %33 = vsyncadd [#allocation5], %s32
      %s35 = sshll.u32 %s3, 4
      %s36 = int_to_ptr.vmem [resolvable:$true] %s35
      %38 = dma.vmem_to_smem %s36, 16, [#allocation6], [#allocation5]
    $region17: #{tpu_custom_call.1} parent=1 // pred_fallthru
      _
    // Predicated region
    $region18: #{tpu_custom_call.1} parent=1 // pred_check
      _
    $region19: #{tpu_custom_call.1} parent=1 // pred_check_branch
      %40 = sbr.rel (0) target = $region21
    $region20: #{tpu_custom_call.1} parent=1 // pred_region
      _
    $region21: #{tpu_custom_call.1} parent=1 // pred_fallthru
      _
    // Predicated region
    $region22: #{tpu_custom_call.1} parent=1 // pred_check
      _
    $region23: #{tpu_custom_call.1} parent=1 // pred_check_branch
      %42 = sbr.rel (0) target = $region25
    $region24: #{tpu_custom_call.1} parent=1 // pred_region
      %43 = dma.done [#allocation3], 8192
    $region25: #{tpu_custom_call.1} parent=1 // pred_fallthru
      _
    // Predicated region
    $region26: #{tpu_custom_call.1} parent=1 // pred_check
      _
    $region27: #{tpu_custom_call.1} parent=1 // pred_check_branch
      %45 = sbr.rel (0) target = $region29
    $region28: #{tpu_custom_call.1} parent=1 // pred_region
      %46 = dma.done [#allocation5], 16
    $region29: #{tpu_custom_call.1} parent=1 // pred_fallthru
      _
    %47 = sfence
    %v48 = vld [vmem:[#allocation2] sm:$0xff]
    %v49 = vld [vmem:[#allocation2 + $0x8] sm:$0xff]
    %v50 = vld [vmem:[#allocation2 + $0x10] sm:$0xff]
    %v51 = vld [vmem:[#allocation2 + $0x18] sm:$0xff]
    %v52 = vld [vmem:[#allocation2 + $0x20] sm:$0xff]
    %v53 = vld [vmem:[#allocation2 + $0x28] sm:$0xff]
    %v54 = vld [vmem:[#allocation2 + $0x30] sm:$0xff]
    %v55 = vld [vmem:[#allocation2 + $0x38] sm:$0xff]
    %v56 = vld [vmem:[#allocation2 + $0x40] sm:$0xff]
    %v57 = vld [vmem:[#allocation2 + $0x48] sm:$0xff]
    %v58 = vld [vmem:[#allocation2 + $0x50] sm:$0xff]
    %v59 = vld [vmem:[#allocation2 + $0x58] sm:$0xff]
    %v60 = vld [vmem:[#allocation2 + $0x60] sm:$0xff]
    %v61 = vld [vmem:[#allocation2 + $0x68] sm:$0xff]
    %v62 = vld [vmem:[#allocation2 + $0x70] sm:$0xff]
    %v63 = vld [vmem:[#allocation2 + $0x78] sm:$0xff]
    %v64 = vld [vmem:[#allocation2 + $0x80] sm:$0xff]
    %v65 = vld [vmem:[#allocation2 + $0x88] sm:$0xff]
    %v66 = vld [vmem:[#allocation2 + $0x90] sm:$0xff]
    %v67 = vld [vmem:[#allocation2 + $0x98] sm:$0xff]
    %v68 = vld [vmem:[#allocation2 + $0xa0] sm:$0xff]
    %v69 = vld [vmem:[#allocation2 + $0xa8] sm:$0xff]
    %v70 = vld [vmem:[#allocation2 + $0xb0] sm:$0xff]
    %v71 = vld [vmem:[#allocation2 + $0xb8] sm:$0xff]
    %v72 = vld [vmem:[#allocation2 + $0xc0] sm:$0xff]
    %v73 = vld [vmem:[#allocation2 + $0xc8] sm:$0xff]
    %v74 = vld [vmem:[#allocation2 + $0xd0] sm:$0xff]
    %v75 = vld [vmem:[#allocation2 + $0xd8] sm:$0xff]
    %v76 = vld [vmem:[#allocation2 + $0xe0] sm:$0xff]
    %v77 = vld [vmem:[#allocation2 + $0xe8] sm:$0xff]
    %v78 = vld [vmem:[#allocation2 + $0xf0] sm:$0xff]
    %v79 = vld [vmem:[#allocation2 + $0xf8] sm:$0xff]
    %v80 = vld [vmem:[#allocation2 + $0x100] sm:$0xff]
    %v81 = vld [vmem:[#allocation2 + $0x108] sm:$0xff]
    %v82 = vld [vmem:[#allocation2 + $0x110] sm:$0xff]
    %v83 = vld [vmem:[#allocation2 + $0x118] sm:$0xff]
    %v84 = vld [vmem:[#allocation2 + $0x120] sm:$0xff]
    %v85 = vld [vmem:[#allocation2 + $0x128] sm:$0xff]
    %v86 = vld [vmem:[#allocation2 + $0x130] sm:$0xff]
    %v87 = vld [vmem:[#allocation2 + $0x138] sm:$0xff]
    %v88 = vld [vmem:[#allocation2 + $0x140] sm:$0xff]
    %v89 = vld [vmem:[#allocation2 + $0x148] sm:$0xff]
    %v90 = vld [vmem:[#allocation2 + $0x150] sm:$0xff]
    %v91 = vld [vmem:[#allocation2 + $0x158] sm:$0xff]
    %v92 = vld [vmem:[#allocation2 + $0x160] sm:$0xff]
    %v93 = vld [vmem:[#allocation2 + $0x168] sm:$0xff]
    %v94 = vld [vmem:[#allocation2 + $0x170] sm:$0xff]
    %v95 = vld [vmem:[#allocation2 + $0x178] sm:$0xff]
    %v96 = vld [vmem:[#allocation2 + $0x180] sm:$0xff]
    %v97 = vld [vmem:[#allocation2 + $0x188] sm:$0xff]
    %v98 = vld [vmem:[#allocation2 + $0x190] sm:$0xff]
    %v99 = vld [vmem:[#allocation2 + $0x198] sm:$0xff]
    %v100 = vld [vmem:[#allocation2 + $0x1a0] sm:$0xff]
    %v101 = vld [vmem:[#allocation2 + $0x1a8] sm:$0xff]
    %v102 = vld [vmem:[#allocation2 + $0x1b0] sm:$0xff]
    %v103 = vld [vmem:[#allocation2 + $0x1b8] sm:$0xff]
    %v104 = vld [vmem:[#allocation2 + $0x1c0] sm:$0xff]
    %v105 = vld [vmem:[#allocation2 + $0x1c8] sm:$0xff]
    %v106 = vld [vmem:[#allocation2 + $0x1d0] sm:$0xff]
    %v107 = vld [vmem:[#allocation2 + $0x1d8] sm:$0xff]
    %v108 = vld [vmem:[#allocation2 + $0x1e0] sm:$0xff]
    %v109 = vld [vmem:[#allocation2 + $0x1e8] sm:$0xff]
    %v110 = vld [vmem:[#allocation2 + $0x1f0] sm:$0xff]
    %v111 = vld [vmem:[#allocation2 + $0x1f8] sm:$0xff]
    %v112 = vadd.f32 %v48, %v49
    %113 = vadd.xlane.f32.xlu0 %v112
    %v114 = vpop.xlane.xlu0 %113
    %v115 = vadd.f32 %v50, %v51
    %116 = vadd.xlane.f32.xlu0 %v115
    %v117 = vpop.xlane.xlu0 %116
    %v118 = vadd.f32 %v52, %v53
    %119 = vadd.xlane.f32.xlu0 %v118
    %v120 = vpop.xlane.xlu0 %119
    %v121 = vadd.f32 %v54, %v55
    %122 = vadd.xlane.f32.xlu0 %v121
    %v123 = vpop.xlane.xlu0 %122
    %v124 = vadd.f32 %v56, %v57
    %125 = vadd.xlane.f32.xlu0 %v124
    %v126 = vpop.xlane.xlu0 %125
    %v127 = vadd.f32 %v58, %v59
    %128 = vadd.xlane.f32.xlu0 %v127
    %v129 = vpop.xlane.xlu0 %128
    %v130 = vadd.f32 %v60, %v61
    %131 = vadd.xlane.f32.xlu0 %v130
    %v132 = vpop.xlane.xlu0 %131
    %v133 = vadd.f32 %v62, %v63
    %134 = vadd.xlane.f32.xlu0 %v133
    %v135 = vpop.xlane.xlu0 %134
    %v136 = vadd.f32 %v64, %v65
    %137 = vadd.xlane.f32.xlu0 %v136
    %v138 = vpop.xlane.xlu0 %137
    %v139 = vadd.f32 %v66, %v67
    %140 = vadd.xlane.f32.xlu0 %v139
    %v141 = vpop.xlane.xlu0 %140
    %v142 = vadd.f32 %v68, %v69
    %143 = vadd.xlane.f32.xlu0 %v142
    %v144 = vpop.xlane.xlu0 %143
    %v145 = vadd.f32 %v70, %v71
    %146 = vadd.xlane.f32.xlu0 %v145
    %v147 = vpop.xlane.xlu0 %146
    %v148 = vadd.f32 %v72, %v73
    %149 = vadd.xlane.f32.xlu0 %v148
    %v150 = vpop.xlane.xlu0 %149
    %v151 = vadd.f32 %v74, %v75
    %152 = vadd.xlane.f32.xlu0 %v151
    %v153 = vpop.xlane.xlu0 %152
    %v154 = vadd.f32 %v76, %v77
    %155 = vadd.xlane.f32.xlu0 %v154
    %v156 = vpop.xlane.xlu0 %155
    %v157 = vadd.f32 %v78, %v79
    %158 = vadd.xlane.f32.xlu0 %v157
    %v159 = vpop.xlane.xlu0 %158
    %v160 = vadd.f32 %v80, %v81
    %161 = vadd.xlane.f32.xlu0 %v160
    %v162 = vpop.xlane.xlu0 %161
    %v163 = vadd.f32 %v82, %v83
    %164 = vadd.xlane.f32.xlu0 %v163
    %v165 = vpop.xlane.xlu0 %164
    %v166 = vadd.f32 %v84, %v85
    %167 = vadd.xlane.f32.xlu0 %v166
    %v168 = vpop.xlane.xlu0 %167
    %v169 = vadd.f32 %v86, %v87
    %170 = vadd.xlane.f32.xlu0 %v169
    %v171 = vpop.xlane.xlu0 %170
    %v172 = vadd.f32 %v88, %v89
    %173 = vadd.xlane.f32.xlu0 %v172
    %v174 = vpop.xlane.xlu0 %173
    %v175 = vadd.f32 %v90, %v91
    %176 = vadd.xlane.f32.xlu0 %v175
    %v177 = vpop.xlane.xlu0 %176
    %v178 = vadd.f32 %v92, %v93
    %179 = vadd.xlane.f32.xlu0 %v178
    %v180 = vpop.xlane.xlu0 %179
    %v181 = vadd.f32 %v94, %v95
    %182 = vadd.xlane.f32.xlu0 %v181
    %v183 = vpop.xlane.xlu0 %182
    %v184 = vadd.f32 %v96, %v97
    %185 = vadd.xlane.f32.xlu0 %v184
    %v186 = vpop.xlane.xlu0 %185
    %v187 = vadd.f32 %v98, %v99
    %188 = vadd.xlane.f32.xlu0 %v187
    %v189 = vpop.xlane.xlu0 %188
    %v190 = vadd.f32 %v100, %v101
    %191 = vadd.xlane.f32.xlu0 %v190
    %v192 = vpop.xlane.xlu0 %191
    %v193 = vadd.f32 %v102, %v103
    %194 = vadd.xlane.f32.xlu0 %v193
    %v195 = vpop.xlane.xlu0 %194
    %v196 = vadd.f32 %v104, %v105
    %197 = vadd.xlane.f32.xlu0 %v196
    %v198 = vpop.xlane.xlu0 %197
    %v199 = vadd.f32 %v106, %v107
    %200 = vadd.xlane.f32.xlu0 %v199
    %v201 = vpop.xlane.xlu0 %200
    %v202 = vadd.f32 %v108, %v109
    %203 = vadd.xlane.f32.xlu0 %v202
    %v204 = vpop.xlane.xlu0 %203
    %v205 = vadd.f32 %v110, %v111
    %206 = vadd.xlane.f32.xlu0 %v205
    %v207 = vpop.xlane.xlu0 %206
    %v208 = vrcp.pop 256.0
    %v209 = vmul.f32 %v114, %v208
    %v210 = vmul.f32 %v117, %v208
    %v211 = vmul.f32 %v120, %v208
    %v212 = vmul.f32 %v123, %v208
    %v213 = vmul.f32 %v126, %v208
    %v214 = vmul.f32 %v129, %v208
    %v215 = vmul.f32 %v132, %v208
    %v216 = vmul.f32 %v135, %v208
    %v217 = vmul.f32 %v138, %v208
    %v218 = vmul.f32 %v141, %v208
    %v219 = vmul.f32 %v144, %v208
    %v220 = vmul.f32 %v147, %v208
    %v221 = vmul.f32 %v150, %v208
    %v222 = vmul.f32 %v153, %v208
    %v223 = vmul.f32 %v156, %v208
    %v224 = vmul.f32 %v159, %v208
    %v225 = vmul.f32 %v162, %v208
    %v226 = vmul.f32 %v165, %v208
    %v227 = vmul.f32 %v168, %v208
    %v228 = vmul.f32 %v171, %v208
    %v229 = vmul.f32 %v174, %v208
    %v230 = vmul.f32 %v177, %v208
    %v231 = vmul.f32 %v180, %v208
    %v232 = vmul.f32 %v183, %v208
    %v233 = vmul.f32 %v186, %v208
    %v234 = vmul.f32 %v189, %v208
    %v235 = vmul.f32 %v192, %v208
    %v236 = vmul.f32 %v195, %v208
    %v237 = vmul.f32 %v198, %v208
    %v238 = vmul.f32 %v201, %v208
    %v239 = vmul.f32 %v204, %v208
    %v240 = vmul.f32 %v207, %v208
    %v241 = vmax.f32 %v48, %v49
    %242 = vmax.xlane.f32.xlu0 %v241
    %v243 = vpop.xlane.xlu0 %242
    %v244 = vmax.f32 %v50, %v51
    %245 = vmax.xlane.f32.xlu0 %v244
    %v246 = vpop.xlane.xlu0 %245
    %v247 = vmax.f32 %v52, %v53
    %248 = vmax.xlane.f32.xlu0 %v247
    %v249 = vpop.xlane.xlu0 %248
    %v250 = vmax.f32 %v54, %v55
    %251 = vmax.xlane.f32.xlu0 %v250
    %v252 = vpop.xlane.xlu0 %251
    %v253 = vmax.f32 %v56, %v57
    %254 = vmax.xlane.f32.xlu0 %v253
    %v255 = vpop.xlane.xlu0 %254
    %v256 = vmax.f32 %v58, %v59
    %257 = vmax.xlane.f32.xlu0 %v256
    %v258 = vpop.xlane.xlu0 %257
    %v259 = vmax.f32 %v60, %v61
    %260 = vmax.xlane.f32.xlu0 %v259
    %v261 = vpop.xlane.xlu0 %260
    %v262 = vmax.f32 %v62, %v63
    %263 = vmax.xlane.f32.xlu0 %v262
    %v264 = vpop.xlane.xlu0 %263
    %v265 = vmax.f32 %v64, %v65
    %266 = vmax.xlane.f32.xlu0 %v265
    %v267 = vpop.xlane.xlu0 %266
    %v268 = vmax.f32 %v66, %v67
    %269 = vmax.xlane.f32.xlu0 %v268
    %v270 = vpop.xlane.xlu0 %269
    %v271 = vmax.f32 %v68, %v69
    %272 = vmax.xlane.f32.xlu0 %v271
    %v273 = vpop.xlane.xlu0 %272
    %v274 = vmax.f32 %v70, %v71
    %275 = vmax.xlane.f32.xlu0 %v274
    %v276 = vpop.xlane.xlu0 %275
    %v277 = vmax.f32 %v72, %v73
    %278 = vmax.xlane.f32.xlu0 %v277
    %v279 = vpop.xlane.xlu0 %278
    %v280 = vmax.f32 %v74, %v75
    %281 = vmax.xlane.f32.xlu0 %v280
    %v282 = vpop.xlane.xlu0 %281
    %v283 = vmax.f32 %v76, %v77
    %284 = vmax.xlane.f32.xlu0 %v283
    %v285 = vpop.xlane.xlu0 %284
    %v286 = vmax.f32 %v78, %v79
    %287 = vmax.xlane.f32.xlu0 %v286
    %v288 = vpop.xlane.xlu0 %287
    %v289 = vmax.f32 %v80, %v81
    %290 = vmax.xlane.f32.xlu0 %v289
    %v291 = vpop.xlane.xlu0 %290
    %v292 = vmax.f32 %v82, %v83
    %293 = vmax.xlane.f32.xlu0 %v292
    %v294 = vpop.xlane.xlu0 %293
    %v295 = vmax.f32 %v84, %v85
    %296 = vmax.xlane.f32.xlu0 %v295
    %v297 = vpop.xlane.xlu0 %296
    %v298 = vmax.f32 %v86, %v87
    %299 = vmax.xlane.f32.xlu0 %v298
    %v300 = vpop.xlane.xlu0 %299
    %v301 = vmax.f32 %v88, %v89
    %302 = vmax.xlane.f32.xlu0 %v301
    %v303 = vpop.xlane.xlu0 %302
    %v304 = vmax.f32 %v90, %v91
    %305 = vmax.xlane.f32.xlu0 %v304
    %v306 = vpop.xlane.xlu0 %305
    %v307 = vmax.f32 %v92, %v93
    %308 = vmax.xlane.f32.xlu0 %v307
    %v309 = vpop.xlane.xlu0 %308
    %v310 = vmax.f32 %v94, %v95
    %311 = vmax.xlane.f32.xlu0 %v310
    %v312 = vpop.xlane.xlu0 %311
    %v313 = vmax.f32 %v96, %v97
    %314 = vmax.xlane.f32.xlu0 %v313
    %v315 = vpop.xlane.xlu0 %314
    %v316 = vmax.f32 %v98, %v99
    %317 = vmax.xlane.f32.xlu0 %v316
    %v318 = vpop.xlane.xlu0 %317
    %v319 = vmax.f32 %v100, %v101
    %320 = vmax.xlane.f32.xlu0 %v319
    %v321 = vpop.xlane.xlu0 %320
    %v322 = vmax.f32 %v102, %v103
    %323 = vmax.xlane.f32.xlu0 %v322
    %v324 = vpop.xlane.xlu0 %323
    %v325 = vmax.f32 %v104, %v105
    %326 = vmax.xlane.f32.xlu0 %v325
    %v327 = vpop.xlane.xlu0 %326
    %v328 = vmax.f32 %v106, %v107
    %329 = vmax.xlane.f32.xlu0 %v328
    %v330 = vpop.xlane.xlu0 %329
    %v331 = vmax.f32 %v108, %v109
    %332 = vmax.xlane.f32.xlu0 %v331
    %v333 = vpop.xlane.xlu0 %332
    %v334 = vmax.f32 %v110, %v111
    %335 = vmax.xlane.f32.xlu0 %v334
    %v336 = vpop.xlane.xlu0 %335
    %v369 = vlaneseq
    %v370 = vand.u32 %v369, 127
    %v371 = vlaneseq
    %v372 = vshrl.u32 %v371, 7
    %v373 = vsub.s32 %v370, %v372
    %v374 = vrot.slane %v209, %v373
    %v375 = vadd.s32 %v370, 4294967288
    %v376 = vlaneseq
    %v377 = vshrl.u32 %v376, 7
    %v378 = vsub.s32 %v375, %v377
    %v379 = vrot.slane %v210, %v378
    %vm380 = vcmask 130112
    %v381 = vsel %vm380, %v379, %v374
    %v382 = vadd.s32 %v370, 4294967280
    %v383 = vlaneseq
    %v384 = vshrl.u32 %v383, 7
    %v385 = vsub.s32 %v382, %v384
    %v386 = vrot.slane %v211, %v385
    %vm387 = vcmask 195712
    %v388 = vsel %vm387, %v386, %v381
    %v389 = vadd.s32 %v370, 4294967272
    %v390 = vlaneseq
    %v391 = vshrl.u32 %v390, 7
    %v392 = vsub.s32 %v389, %v391
    %v393 = vrot.slane %v212, %v392
    %vm394 = vcmask 261312
    %v395 = vsel %vm394, %v393, %v388
    %v396 = vlaneseq
    %v397 = vshrl.u32 %v396, 7
    %v398 = vsub.s32 %v370, %v397
    %v399 = vrot.slane %v213, %v398
    %v400 = vlaneseq
    %v401 = vshrl.u32 %v400, 7
    %v402 = vsub.s32 %v375, %v401
    %v403 = vrot.slane %v214, %v402
    %v404 = vsel %vm380, %v403, %v399
    %v405 = vlaneseq
    %v406 = vshrl.u32 %v405, 7
    %v407 = vsub.s32 %v382, %v406
    %v408 = vrot.slane %v215, %v407
    %v409 = vsel %vm387, %v408, %v404
    %v410 = vlaneseq
    %v411 = vshrl.u32 %v410, 7
    %v412 = vsub.s32 %v389, %v411
    %v413 = vrot.slane %v216, %v412
    %v414 = vsel %vm394, %v413, %v409
    %v415 = vlaneseq
    %v416 = vshrl.u32 %v415, 7
    %v417 = vsub.s32 %v370, %v416
    %v418 = vrot.slane %v217, %v417
    %v419 = vlaneseq
    %v420 = vshrl.u32 %v419, 7
    %v421 = vsub.s32 %v375, %v420
    %v422 = vrot.slane %v218, %v421
    %v423 = vsel %vm380, %v422, %v418
    %v424 = vlaneseq
    %v425 = vshrl.u32 %v424, 7
    %v426 = vsub.s32 %v382, %v425
    %v427 = vrot.slane %v219, %v426
    %v428 = vsel %vm387, %v427, %v423
    %v429 = vlaneseq
    %v430 = vshrl.u32 %v429, 7
    %v431 = vsub.s32 %v389, %v430
    %v432 = vrot.slane %v220, %v431
    %v433 = vsel %vm394, %v432, %v428
    %v434 = vlaneseq
    %v435 = vshrl.u32 %v434, 7
    %v436 = vsub.s32 %v370, %v435
    %v437 = vrot.slane %v221, %v436
    %v438 = vlaneseq
    %v439 = vshrl.u32 %v438, 7
    %v440 = vsub.s32 %v375, %v439
    %v441 = vrot.slane %v222, %v440
    %v442 = vsel %vm380, %v441, %v437
    %v443 = vlaneseq
    %v444 = vshrl.u32 %v443, 7
    %v445 = vsub.s32 %v382, %v444
    %v446 = vrot.slane %v223, %v445
    %v447 = vsel %vm387, %v446, %v442
    %v448 = vlaneseq
    %v449 = vshrl.u32 %v448, 7
    %v450 = vsub.s32 %v389, %v449
    %v451 = vrot.slane %v224, %v450
    %v452 = vsel %vm394, %v451, %v447
    %v453 = vlaneseq
    %v454 = vshrl.u32 %v453, 7
    %v455 = vsub.s32 %v370, %v454
    %v456 = vrot.slane %v225, %v455
    %v457 = vlaneseq
    %v458 = vshrl.u32 %v457, 7
    %v459 = vsub.s32 %v375, %v458
    %v460 = vrot.slane %v226, %v459
    %v461 = vsel %vm380, %v460, %v456
    %v462 = vlaneseq
    %v463 = vshrl.u32 %v462, 7
    %v464 = vsub.s32 %v382, %v463
    %v465 = vrot.slane %v227, %v464
    %v466 = vsel %vm387, %v465, %v461
    %v467 = vlaneseq
    %v468 = vshrl.u32 %v467, 7
    %v469 = vsub.s32 %v389, %v468
    %v470 = vrot.slane %v228, %v469
    %v471 = vsel %vm394, %v470, %v466
    %v472 = vlaneseq
    %v473 = vshrl.u32 %v472, 7
    %v474 = vsub.s32 %v370, %v473
    %v475 = vrot.slane %v229, %v474
    %v476 = vlaneseq
    %v477 = vshrl.u32 %v476, 7
    %v478 = vsub.s32 %v375, %v477
    %v479 = vrot.slane %v230, %v478
    %v480 = vsel %vm380, %v479, %v475
    %v481 = vlaneseq
    %v482 = vshrl.u32 %v481, 7
    %v483 = vsub.s32 %v382, %v482
    %v484 = vrot.slane %v231, %v483
    %v485 = vsel %vm387, %v484, %v480
    %v486 = vlaneseq
    %v487 = vshrl.u32 %v486, 7
    %v488 = vsub.s32 %v389, %v487
    %v489 = vrot.slane %v232, %v488
    %v490 = vsel %vm394, %v489, %v485
    %v491 = vlaneseq
    %v492 = vshrl.u32 %v491, 7
    %v493 = vsub.s32 %v370, %v492
    %v494 = vrot.slane %v233, %v493
    %v495 = vlaneseq
    %v496 = vshrl.u32 %v495, 7
    %v497 = vsub.s32 %v375, %v496
    %v498 = vrot.slane %v234, %v497
    %v499 = vsel %vm380, %v498, %v494
    %v500 = vlaneseq
    %v501 = vshrl.u32 %v500, 7
    %v502 = vsub.s32 %v382, %v501
    %v503 = vrot.slane %v235, %v502
    %v504 = vsel %vm387, %v503, %v499
    %v505 = vlaneseq
    %v506 = vshrl.u32 %v505, 7
    %v507 = vsub.s32 %v389, %v506
    %v508 = vrot.slane %v236, %v507
    %v509 = vsel %vm394, %v508, %v504
    %v510 = vlaneseq
    %v511 = vshrl.u32 %v510, 7
    %v512 = vsub.s32 %v370, %v511
    %v513 = vrot.slane %v237, %v512
    %v514 = vlaneseq
    %v515 = vshrl.u32 %v514, 7
    %v516 = vsub.s32 %v375, %v515
    %v517 = vrot.slane %v238, %v516
    %v518 = vsel %vm380, %v517, %v513
    %v519 = vlaneseq
    %v520 = vshrl.u32 %v519, 7
    %v521 = vsub.s32 %v382, %v520
    %v522 = vrot.slane %v239, %v521
    %v523 = vsel %vm387, %v522, %v518
    %v524 = vlaneseq
    %v525 = vshrl.u32 %v524, 7
    %v526 = vsub.s32 %v389, %v525
    %v527 = vrot.slane %v240, %v526
    %v528 = vsel %vm394, %v527, %v523
    %vm529 = vcmask 1041409
    %v530 = vsel %vm529, %v414, %v395
    %vm531 = vcmask 1042434
    %v532 = vsel %vm531, %v433, %v530
    %vm533 = vcmask 1043459
    %v534 = vsel %vm533, %v452, %v532
    %vm535 = vcmask 1044484
    %v536 = vsel %vm535, %v471, %v534
    %vm537 = vcmask 1045509
    %v538 = vsel %vm537, %v490, %v536
    %vm539 = vcmask 1046534
    %v540 = vsel %vm539, %v509, %v538
    %vm541 = vcmask 1047559
    %v542 = vsel %vm541, %v528, %v540
    %v575 = vlaneseq
    %v576 = vshrl.u32 %v575, 7
    %v577 = vsub.s32 %v370, %v576
    %v578 = vrot.slane %v243, %v577
    %v579 = vlaneseq
    %v580 = vshrl.u32 %v579, 7
    %v581 = vsub.s32 %v375, %v580
    %v582 = vrot.slane %v246, %v581
    %v583 = vsel %vm380, %v582, %v578
    %v584 = vlaneseq
    %v585 = vshrl.u32 %v584, 7
    %v586 = vsub.s32 %v382, %v585
    %v587 = vrot.slane %v249, %v586
    %v588 = vsel %vm387, %v587, %v583
    %v589 = vlaneseq
    %v590 = vshrl.u32 %v589, 7
    %v591 = vsub.s32 %v389, %v590
    %v592 = vrot.slane %v252, %v591
    %v593 = vsel %vm394, %v592, %v588
    %v594 = vlaneseq
    %v595 = vshrl.u32 %v594, 7
    %v596 = vsub.s32 %v370, %v595
    %v597 = vrot.slane %v255, %v596
    %v598 = vlaneseq
    %v599 = vshrl.u32 %v598, 7
    %v600 = vsub.s32 %v375, %v599
    %v601 = vrot.slane %v258, %v600
    %v602 = vsel %vm380, %v601, %v597
    %v603 = vlaneseq
    %v604 = vshrl.u32 %v603, 7
    %v605 = vsub.s32 %v382, %v604
    %v606 = vrot.slane %v261, %v605
    %v607 = vsel %vm387, %v606, %v602
    %v608 = vlaneseq
    %v609 = vshrl.u32 %v608, 7
    %v610 = vsub.s32 %v389, %v609
    %v611 = vrot.slane %v264, %v610
    %v612 = vsel %vm394, %v611, %v607
    %v613 = vlaneseq
    %v614 = vshrl.u32 %v613, 7
    %v615 = vsub.s32 %v370, %v614
    %v616 = vrot.slane %v267, %v615
    %v617 = vlaneseq
    %v618 = vshrl.u32 %v617, 7
    %v619 = vsub.s32 %v375, %v618
    %v620 = vrot.slane %v270, %v619
    %v621 = vsel %vm380, %v620, %v616
    %v622 = vlaneseq
    %v623 = vshrl.u32 %v622, 7
    %v624 = vsub.s32 %v382, %v623
    %v625 = vrot.slane %v273, %v624
    %v626 = vsel %vm387, %v625, %v621
    %v627 = vlaneseq
    %v628 = vshrl.u32 %v627, 7
    %v629 = vsub.s32 %v389, %v628
    %v630 = vrot.slane %v276, %v629
    %v631 = vsel %vm394, %v630, %v626
    %v632 = vlaneseq
    %v633 = vshrl.u32 %v632, 7
    %v634 = vsub.s32 %v370, %v633
    %v635 = vrot.slane %v279, %v634
    %v636 = vlaneseq
    %v637 = vshrl.u32 %v636, 7
    %v638 = vsub.s32 %v375, %v637
    %v639 = vrot.slane %v282, %v638
    %v640 = vsel %vm380, %v639, %v635
    %v641 = vlaneseq
    %v642 = vshrl.u32 %v641, 7
    %v643 = vsub.s32 %v382, %v642
    %v644 = vrot.slane %v285, %v643
    %v645 = vsel %vm387, %v644, %v640
    %v646 = vlaneseq
    %v647 = vshrl.u32 %v646, 7
    %v648 = vsub.s32 %v389, %v647
    %v649 = vrot.slane %v288, %v648
    %v650 = vsel %vm394, %v649, %v645
    %v651 = vlaneseq
    %v652 = vshrl.u32 %v651, 7
    %v653 = vsub.s32 %v370, %v652
    %v654 = vrot.slane %v291, %v653
    %v655 = vlaneseq
    %v656 = vshrl.u32 %v655, 7
    %v657 = vsub.s32 %v375, %v656
    %v658 = vrot.slane %v294, %v657
    %v659 = vsel %vm380, %v658, %v654
    %v660 = vlaneseq
    %v661 = vshrl.u32 %v660, 7
    %v662 = vsub.s32 %v382, %v661
    %v663 = vrot.slane %v297, %v662
    %v664 = vsel %vm387, %v663, %v659
    %v665 = vlaneseq
    %v666 = vshrl.u32 %v665, 7
    %v667 = vsub.s32 %v389, %v666
    %v668 = vrot.slane %v300, %v667
    %v669 = vsel %vm394, %v668, %v664
    %v670 = vlaneseq
    %v671 = vshrl.u32 %v670, 7
    %v672 = vsub.s32 %v370, %v671
    %v673 = vrot.slane %v303, %v672
    %v674 = vlaneseq
    %v675 = vshrl.u32 %v674, 7
    %v676 = vsub.s32 %v375, %v675
    %v677 = vrot.slane %v306, %v676
    %v678 = vsel %vm380, %v677, %v673
    %v679 = vlaneseq
    %v680 = vshrl.u32 %v679, 7
    %v681 = vsub.s32 %v382, %v680
    %v682 = vrot.slane %v309, %v681
    %v683 = vsel %vm387, %v682, %v678
    %v684 = vlaneseq
    %v685 = vshrl.u32 %v684, 7
    %v686 = vsub.s32 %v389, %v685
    %v687 = vrot.slane %v312, %v686
    %v688 = vsel %vm394, %v687, %v683
    %v689 = vlaneseq
    %v690 = vshrl.u32 %v689, 7
    %v691 = vsub.s32 %v370, %v690
    %v692 = vrot.slane %v315, %v691
    %v693 = vlaneseq
    %v694 = vshrl.u32 %v693, 7
    %v695 = vsub.s32 %v375, %v694
    %v696 = vrot.slane %v318, %v695
    %v697 = vsel %vm380, %v696, %v692
    %v698 = vlaneseq
    %v699 = vshrl.u32 %v698, 7
    %v700 = vsub.s32 %v382, %v699
    %v701 = vrot.slane %v321, %v700
    %v702 = vsel %vm387, %v701, %v697
    %v703 = vlaneseq
    %v704 = vshrl.u32 %v703, 7
    %v705 = vsub.s32 %v389, %v704
    %v706 = vrot.slane %v324, %v705
    %v707 = vsel %vm394, %v706, %v702
    %v708 = vlaneseq
    %v709 = vshrl.u32 %v708, 7
    %v710 = vsub.s32 %v370, %v709
    %v711 = vrot.slane %v327, %v710
    %v712 = vlaneseq
    %v713 = vshrl.u32 %v712, 7
    %v714 = vsub.s32 %v375, %v713
    %v715 = vrot.slane %v330, %v714
    %v716 = vsel %vm380, %v715, %v711
    %v717 = vlaneseq
    %v718 = vshrl.u32 %v717, 7
    %v719 = vsub.s32 %v382, %v718
    %v720 = vrot.slane %v333, %v719
    %v721 = vsel %vm387, %v720, %v716
    %v722 = vlaneseq
    %v723 = vshrl.u32 %v722, 7
    %v724 = vsub.s32 %v389, %v723
    %v725 = vrot.slane %v336, %v724
    %v726 = vsel %vm394, %v725, %v721
    %v727 = vsel %vm529, %v612, %v593
    %v728 = vsel %vm531, %v631, %v727
    %v729 = vsel %vm533, %v650, %v728
    %v730 = vsel %vm535, %v669, %v729
    %v731 = vsel %vm537, %v688, %v730
    %v732 = vsel %vm539, %v707, %v731
    %v733 = vsel %vm541, %v726, %v732
    %v734 = vld [vmem:[%s1] sm:$0xff]
    %v735 = vld [vmem:[%s1 + $0x8] sm:$0xff]
    %v736 = vld [vmem:[%s1 + $0x10] sm:$0xff]
    %v737 = vld [vmem:[%s1 + $0x18] sm:$0xff]
    %v738 = vld [vmem:[%s2] sm:$0x3]
    %vm739 = vcmask 261120
    %v740 = vsel %vm739, %v542, 0
    %v742 = vsel %vm739, %v733, 0
    %744 = vmatprep.subr.mxu0 0.0
    %745 = vmatpush1.msra.mxu0 %v734
    %746 = vmatprep.subr.mxu0 0.0
    %747 = vmatpush1.msra.mxu0 %v735
    %748 = vmatprep.subr.mxu0 0.0
    %749 = vmatpush1.msra.mxu0 %v736
    %750 = vmatprep.subr.mxu0 0.0
    %751 = vmatpush1.msra.mxu0 %v737
    %752 = vmatprep.subr.mxu0 0.0
    %753 = vmatpush1.msra.mxu0 0.0
    %754 = vmatprep.subr.mxu0 0.0
    %755 = vmatpush1.msra.mxu0 0.0
    %756 = vmatprep.subr.mxu0 0.0
    %757 = vmatpush1.msra.mxu0 0.0
    %758 = vmatprep.subr.mxu0 0.0
    %759 = vmatpush1.msra.mxu0 0.0
    %760 = vmatprep.subr.mxu0 0.0
    %761 = vmatpush1.msra.mxu0 0.0
    %762 = vmatprep.subr.mxu0 0.0
    %763 = vmatpush1.msra.mxu0 0.0
    %764 = vmatprep.subr.mxu0 0.0
    %765 = vmatpush1.msra.mxu0 0.0
    %766 = vmatprep.subr.mxu0 0.0
    %767 = vmatpush1.msra.mxu0 0.0
    %768 = vmatprep.subr.mxu0 0.0
    %769 = vmatpush1.msra.mxu0 0.0
    %770 = vmatprep.subr.mxu0 0.0
    %771 = vmatpush1.msra.mxu0 0.0
    %772 = vmatprep.subr.mxu0 0.0
    %773 = vmatpush1.msra.mxu0 0.0
    %774 = vmatprep.subr.mxu0 0.0
    %775 = vmatpush1.msra.mxu0 0.0
    %776 = vmatprep.subr.mxu0 0.0
    %777 = vmatpush1.msra.mxu0 0.0
    %778 = vmatprep.subr.mxu0 0.0
    %779 = vmatpush1.msra.mxu0 0.0
    %780 = vmatprep.subr.mxu0 0.0
    %781 = vmatpush1.msra.mxu0 0.0
    %782 = vmatprep.subr.mxu0 0.0
    %783 = vmatpush1.msra.mxu0 0.0
    %784 = vmatprep.subr.mxu0 0.0
    %785 = vmatpush1.msra.mxu0 0.0
    %786 = vmatprep.subr.mxu0 0.0
    %787 = vmatpush1.msra.mxu0 0.0
    %788 = vmatprep.subr.mxu0 0.0
    %789 = vmatpush1.msra.mxu0 0.0
    %790 = vmatprep.subr.mxu0 0.0
    %791 = vmatpush1.msra.mxu0 0.0
    %792 = vmatprep.subr.mxu0 0.0
    %793 = vmatpush1.msra.mxu0 0.0
    %794 = vmatprep.subr.mxu0 0.0
    %795 = vmatpush1.msra.mxu0 0.0
    %796 = vmatprep.subr.mxu0 0.0
    %797 = vmatpush1.msra.mxu0 0.0
    %798 = vmatprep.subr.mxu0 0.0
    %799 = vmatpush1.msra.mxu0 0.0
    %800 = vmatprep.subr.mxu0 0.0
    %801 = vmatpush1.msra.mxu0 0.0
    %802 = vmatprep.subr.mxu0 0.0
    %803 = vmatpush1.msra.mxu0 0.0
    %804 = vmatprep.subr.mxu0 0.0
    %805 = vmatpush1.msra.mxu0 0.0
    %806 = vmatprep.subr.mxu0 0.0
    %807 = vmatpush1.msra.mxu0 0.0
    %808 = vmatprep.mubr.f32.mxu0 0.0
    %809 = vmatmul.mubr.f32.gmra.mrb[0].mxu0 %v740
    %v810 = vpop.f32.mrb[0].mxu0
    %v811 = vadd.f32 0.0, %v810
    %v812 = vpop.f32.mrb[0].mxu0
    %813 = vmatprep.mubr.f32.mxu0 0.0
    %814 = vmatmul.mubr.f32.gmra.mrb[0].mxu0 %v742
    %v815 = vpop.f32.mrb[0].mxu0
    %v816 = vadd.f32 0.0, %v815
    %v817 = vpop.f32.mrb[0].mxu0
    %818 = vdwg.mxu0
    %v819 = vmax.f32 %v811, 0.0
    %v820 = vmax.f32 %v816, 0.0
    %v821 = vadd.f32 %v819, %v820
    %vm822 = vcmask 15360
    %v824 = vsel %vm822, %v821, 0
    %vm826 = vcmask 1041408
    %v828 = vsel %vm826, %v738, 0
    %830 = vmatprep.subr.mxu0 0.0
    %831 = vmatpush1.msra.mxu0 %v828
    %832 = vmatprep.subr.mxu0 0.0
    %833 = vmatpush1.msra.mxu0 0.0
    %834 = vmatprep.subr.mxu0 0.0
    %835 = vmatpush1.msra.mxu0 0.0
    %836 = vmatprep.subr.mxu0 0.0
    %837 = vmatpush1.msra.mxu0 0.0
    %838 = vmatprep.subr.mxu0 0.0
    %839 = vmatpush1.msra.mxu0 0.0
    %840 = vmatprep.subr.mxu0 0.0
    %841 = vmatpush1.msra.mxu0 0.0
    %842 = vmatprep.subr.mxu0 0.0
    %843 = vmatpush1.msra.mxu0 0.0
    %844 = vmatprep.subr.mxu0 0.0
    %845 = vmatpush1.msra.mxu0 0.0
    %846 = vmatprep.subr.mxu0 0.0
    %847 = vmatpush1.msra.mxu0 0.0
    %848 = vmatprep.subr.mxu0 0.0
    %849 = vmatpush1.msra.mxu0 0.0
    %850 = vmatprep.subr.mxu0 0.0
    %851 = vmatpush1.msra.mxu0 0.0
    %852 = vmatprep.subr.mxu0 0.0
    %853 = vmatpush1.msra.mxu0 0.0
    %854 = vmatprep.subr.mxu0 0.0
    %855 = vmatpush1.msra.mxu0 0.0
    %856 = vmatprep.subr.mxu0 0.0
    %857 = vmatpush1.msra.mxu0 0.0
    %858 = vmatprep.subr.mxu0 0.0
    %859 = vmatpush1.msra.mxu0 0.0
    %860 = vmatprep.subr.mxu0 0.0
    %861 = vmatpush1.msra.mxu0 0.0
    %862 = vmatprep.subr.mxu0 0.0
    %863 = vmatpush1.msra.mxu0 0.0
    %864 = vmatprep.subr.mxu0 0.0
    %865 = vmatpush1.msra.mxu0 0.0
    %866 = vmatprep.subr.mxu0 0.0
    %867 = vmatpush1.msra.mxu0 0.0
    %868 = vmatprep.subr.mxu0 0.0
    %869 = vmatpush1.msra.mxu0 0.0
    %870 = vmatprep.subr.mxu0 0.0
    %871 = vmatpush1.msra.mxu0 0.0
    %872 = vmatprep.subr.mxu0 0.0
    %873 = vmatpush1.msra.mxu0 0.0
    %874 = vmatprep.subr.mxu0 0.0
    %875 = vmatpush1.msra.mxu0 0.0
    %876 = vmatprep.subr.mxu0 0.0
    %877 = vmatpush1.msra.mxu0 0.0
    %878 = vmatprep.subr.mxu0 0.0
    %879 = vmatpush1.msra.mxu0 0.0
    %880 = vmatprep.subr.mxu0 0.0
    %881 = vmatpush1.msra.mxu0 0.0
    %882 = vmatprep.subr.mxu0 0.0
    %883 = vmatpush1.msra.mxu0 0.0
    %884 = vmatprep.subr.mxu0 0.0
    %885 = vmatpush1.msra.mxu0 0.0
    %886 = vmatprep.subr.mxu0 0.0
    %887 = vmatpush1.msra.mxu0 0.0
    %888 = vmatprep.subr.mxu0 0.0
    %889 = vmatpush1.msra.mxu0 0.0
    %890 = vmatprep.subr.mxu0 0.0
    %891 = vmatpush1.msra.mxu0 0.0
    %892 = vmatprep.subr.mxu0 0.0
    %893 = vmatpush1.msra.mxu0 0.0
    %894 = vmatprep.mubr.f32.mxu0 0.0
    %895 = vmatmul.mubr.f32.gmra.mrb[0].mxu0 %v824
    %v896 = vpop.f32.mrb[0].mxu0
    %v897 = vadd.f32 0.0, %v896
    %v898 = vpop.f32.mrb[0].mxu0
    %899 = vdwg.mxu0
    %v900 = vxor.u32 %v897, 2147483648
    %v901 = vmul.f32 %v900, 1.442695
    %v902 = vpow.pop %v901
    %v903 = vadd.f32 %v902, 1.0
    %v904 = vrcp.pop %v903
    %v905 = vmul.f32 1.0, %v904
    %v906 = vlaneseq
    %v907 = vshrl.u32 %v906, 7
    %v908 = vsub.s32 0, %v907
    %v909 = vrot.slane %v905, %v908
    %911 = vbcast.lane.b32.xlu0 %v909, 256
    %v912 = vpop.permute.xlu0 %911
    %s914 = sor.u32 256, 8
    %915 = vbcast.lane.b32.xlu0 %v909, %s914
    %v916 = vpop.permute.xlu0 %915
    %s918 = sor.u32 256, 16
    %919 = vbcast.lane.b32.xlu0 %v909, %s918
    %v920 = vpop.permute.xlu0 %919
    %s922 = sor.u32 256, 24
    %923 = vbcast.lane.b32.xlu0 %v909, %s922
    %v924 = vpop.permute.xlu0 %923
    %v925 = vlaneseq
    %v926 = vshrl.u32 %v925, 7
    %v927 = vsub.s32 1, %v926
    %v928 = vrot.slane %v905, %v927
    %930 = vbcast.lane.b32.xlu0 %v928, 256
    %v931 = vpop.permute.xlu0 %930
    %s933 = sor.u32 256, 8
    %934 = vbcast.lane.b32.xlu0 %v928, %s933
    %v935 = vpop.permute.xlu0 %934
    %s937 = sor.u32 256, 16
    %938 = vbcast.lane.b32.xlu0 %v928, %s937
    %v939 = vpop.permute.xlu0 %938
    %s941 = sor.u32 256, 24
    %942 = vbcast.lane.b32.xlu0 %v928, %s941
    %v943 = vpop.permute.xlu0 %942
    %v944 = vlaneseq
    %v945 = vshrl.u32 %v944, 7
    %v946 = vsub.s32 2, %v945
    %v947 = vrot.slane %v905, %v946
    %949 = vbcast.lane.b32.xlu0 %v947, 256
    %v950 = vpop.permute.xlu0 %949
    %s952 = sor.u32 256, 8
    %953 = vbcast.lane.b32.xlu0 %v947, %s952
    %v954 = vpop.permute.xlu0 %953
    %s956 = sor.u32 256, 16
    %957 = vbcast.lane.b32.xlu0 %v947, %s956
    %v958 = vpop.permute.xlu0 %957
    %s960 = sor.u32 256, 24
    %961 = vbcast.lane.b32.xlu0 %v947, %s960
    %v962 = vpop.permute.xlu0 %961
    %v963 = vlaneseq
    %v964 = vshrl.u32 %v963, 7
    %v965 = vsub.s32 3, %v964
    %v966 = vrot.slane %v905, %v965
    %968 = vbcast.lane.b32.xlu0 %v966, 256
    %v969 = vpop.permute.xlu0 %968
    %s971 = sor.u32 256, 8
    %972 = vbcast.lane.b32.xlu0 %v966, %s971
    %v973 = vpop.permute.xlu0 %972
    %s975 = sor.u32 256, 16
    %976 = vbcast.lane.b32.xlu0 %v966, %s975
    %v977 = vpop.permute.xlu0 %976
    %s979 = sor.u32 256, 24
    %980 = vbcast.lane.b32.xlu0 %v966, %s979
    %v981 = vpop.permute.xlu0 %980
    %v982 = vlaneseq
    %v983 = vshrl.u32 %v982, 7
    %v984 = vsub.s32 4, %v983
    %v985 = vrot.slane %v905, %v984
    %987 = vbcast.lane.b32.xlu0 %v985, 256
    %v988 = vpop.permute.xlu0 %987
    %s990 = sor.u32 256, 8
    %991 = vbcast.lane.b32.xlu0 %v985, %s990
    %v992 = vpop.permute.xlu0 %991
    %s994 = sor.u32 256, 16
    %995 = vbcast.lane.b32.xlu0 %v985, %s994
    %v996 = vpop.permute.xlu0 %995
    %s998 = sor.u32 256, 24
    %999 = vbcast.lane.b32.xlu0 %v985, %s998
    %v1000 = vpop.permute.xlu0 %999
    %v1001 = vlaneseq
    %v1002 = vshrl.u32 %v1001, 7
    %v1003 = vsub.s32 5, %v1002
    %v1004 = vrot.slane %v905, %v1003
    %1006 = vbcast.lane.b32.xlu0 %v1004, 256
    %v1007 = vpop.permute.xlu0 %1006
    %s1009 = sor.u32 256, 8
    %1010 = vbcast.lane.b32.xlu0 %v1004, %s1009
    %v1011 = vpop.permute.xlu0 %1010
    %s1013 = sor.u32 256, 16
    %1014 = vbcast.lane.b32.xlu0 %v1004, %s1013
    %v1015 = vpop.permute.xlu0 %1014
    %s1017 = sor.u32 256, 24
    %1018 = vbcast.lane.b32.xlu0 %v1004, %s1017
    %v1019 = vpop.permute.xlu0 %1018
    %v1020 = vlaneseq
    %v1021 = vshrl.u32 %v1020, 7
    %v1022 = vsub.s32 6, %v1021
    %v1023 = vrot.slane %v905, %v1022
    %1025 = vbcast.lane.b32.xlu0 %v1023, 256
    %v1026 = vpop.permute.xlu0 %1025
    %s1028 = sor.u32 256, 8
    %1029 = vbcast.lane.b32.xlu0 %v1023, %s1028
    %v1030 = vpop.permute.xlu0 %1029
    %s1032 = sor.u32 256, 16
    %1033 = vbcast.lane.b32.xlu0 %v1023, %s1032
    %v1034 = vpop.permute.xlu0 %1033
    %s1036 = sor.u32 256, 24
    %1037 = vbcast.lane.b32.xlu0 %v1023, %s1036
    %v1038 = vpop.permute.xlu0 %1037
    %v1039 = vlaneseq
    %v1040 = vshrl.u32 %v1039, 7
    %v1041 = vsub.s32 7, %v1040
    %v1042 = vrot.slane %v905, %v1041
    %1044 = vbcast.lane.b32.xlu0 %v1042, 256
    %v1045 = vpop.permute.xlu0 %1044
    %s1047 = sor.u32 256, 8
    %1048 = vbcast.lane.b32.xlu0 %v1042, %s1047
    %v1049 = vpop.permute.xlu0 %1048
    %s1051 = sor.u32 256, 16
    %1052 = vbcast.lane.b32.xlu0 %v1042, %s1051
    %v1053 = vpop.permute.xlu0 %1052
    %s1055 = sor.u32 256, 24
    %1056 = vbcast.lane.b32.xlu0 %v1042, %s1055
    %v1057 = vpop.permute.xlu0 %1056
    %v1058 = vmul.f32 %v48, %v912
    %v1059 = vmul.f32 %v49, %v912
    %v1060 = vmul.f32 %v50, %v916
    %v1061 = vmul.f32 %v51, %v916
    %v1062 = vmul.f32 %v52, %v920
    %v1063 = vmul.f32 %v53, %v920
    %v1064 = vmul.f32 %v54, %v924
    %v1065 = vmul.f32 %v55, %v924
    %v1066 = vmul.f32 %v56, %v931
    %v1067 = vmul.f32 %v57, %v931
    %v1068 = vmul.f32 %v58, %v935
    %v1069 = vmul.f32 %v59, %v935
    %v1070 = vmul.f32 %v60, %v939
    %v1071 = vmul.f32 %v61, %v939
    %v1072 = vmul.f32 %v62, %v943
    %v1073 = vmul.f32 %v63, %v943
    %v1074 = vmul.f32 %v64, %v950
    %v1075 = vmul.f32 %v65, %v950
    %v1076 = vmul.f32 %v66, %v954
    %v1077 = vmul.f32 %v67, %v954
    %v1078 = vmul.f32 %v68, %v958
    %v1079 = vmul.f32 %v69, %v958
    %v1080 = vmul.f32 %v70, %v962
    %v1081 = vmul.f32 %v71, %v962
    %v1082 = vmul.f32 %v72, %v969
    %v1083 = vmul.f32 %v73, %v969
    %v1084 = vmul.f32 %v74, %v973
    %v1085 = vmul.f32 %v75, %v973
    %v1086 = vmul.f32 %v76, %v977
    %v1087 = vmul.f32 %v77, %v977
    %v1088 = vmul.f32 %v78, %v981
    %v1089 = vmul.f32 %v79, %v981
    %v1090 = vmul.f32 %v80, %v988
    %v1091 = vmul.f32 %v81, %v988
    %v1092 = vmul.f32 %v82, %v992
    %v1093 = vmul.f32 %v83, %v992
    %v1094 = vmul.f32 %v84, %v996
    %v1095 = vmul.f32 %v85, %v996
    %v1096 = vmul.f32 %v86, %v1000
    %v1097 = vmul.f32 %v87, %v1000
    %v1098 = vmul.f32 %v88, %v1007
    %v1099 = vmul.f32 %v89, %v1007
    %v1100 = vmul.f32 %v90, %v1011
    %v1101 = vmul.f32 %v91, %v1011
    %v1102 = vmul.f32 %v92, %v1015
    %v1103 = vmul.f32 %v93, %v1015
    %v1104 = vmul.f32 %v94, %v1019
    %v1105 = vmul.f32 %v95, %v1019
    %v1106 = vmul.f32 %v96, %v1026
    %v1107 = vmul.f32 %v97, %v1026
    %v1108 = vmul.f32 %v98, %v1030
    %v1109 = vmul.f32 %v99, %v1030
    %v1110 = vmul.f32 %v100, %v1034
    %v1111 = vmul.f32 %v101, %v1034
    %v1112 = vmul.f32 %v102, %v1038
    %v1113 = vmul.f32 %v103, %v1038
    %v1114 = vmul.f32 %v104, %v1045
    %v1115 = vmul.f32 %v105, %v1045
    %v1116 = vmul.f32 %v106, %v1049
    %v1117 = vmul.f32 %v107, %v1049
    %v1118 = vmul.f32 %v108, %v1053
    %v1119 = vmul.f32 %v109, %v1053
    %v1120 = vmul.f32 %v110, %v1057
    %v1121 = vmul.f32 %v111, %v1057
    %v1122 = vadd.f32 %v1058, %v1060
    %v1123 = vadd.f32 %v1122, %v1062
    %v1124 = vadd.f32 %v1123, %v1064
    %v1125 = vrot.slane %v1124, 4
    %v1126 = vadd.f32 %v1124, %v1125
    %v1127 = vrot.slane %v1126, 2
    %v1128 = vadd.f32 %v1126, %v1127
    %v1129 = vrot.slane %v1128, 1
    %v1130 = vadd.f32 %v1128, %v1129
    %v1131 = vadd.f32 %v1059, %v1061
    %v1132 = vadd.f32 %v1131, %v1063
    %v1133 = vadd.f32 %v1132, %v1065
    %v1134 = vrot.slane %v1133, 4
    %v1135 = vadd.f32 %v1133, %v1134
    %v1136 = vrot.slane %v1135, 2
    %v1137 = vadd.f32 %v1135, %v1136
    %v1138 = vrot.slane %v1137, 1
    %v1139 = vadd.f32 %v1137, %v1138
    %v1140 = vadd.f32 %v1066, %v1068
    %v1141 = vadd.f32 %v1140, %v1070
    %v1142 = vadd.f32 %v1141, %v1072
    %v1143 = vrot.slane %v1142, 4
    %v1144 = vadd.f32 %v1142, %v1143
    %v1145 = vrot.slane %v1144, 2
    %v1146 = vadd.f32 %v1144, %v1145
    %v1147 = vrot.slane %v1146, 1
    %v1148 = vadd.f32 %v1146, %v1147
    %v1149 = vadd.f32 %v1067, %v1069
    %v1150 = vadd.f32 %v1149, %v1071
    %v1151 = vadd.f32 %v1150, %v1073
    %v1152 = vrot.slane %v1151, 4
    %v1153 = vadd.f32 %v1151, %v1152
    %v1154 = vrot.slane %v1153, 2
    %v1155 = vadd.f32 %v1153, %v1154
    %v1156 = vrot.slane %v1155, 1
    %v1157 = vadd.f32 %v1155, %v1156
    %v1158 = vadd.f32 %v1074, %v1076
    %v1159 = vadd.f32 %v1158, %v1078
    %v1160 = vadd.f32 %v1159, %v1080
    %v1161 = vrot.slane %v1160, 4
    %v1162 = vadd.f32 %v1160, %v1161
    %v1163 = vrot.slane %v1162, 2
    %v1164 = vadd.f32 %v1162, %v1163
    %v1165 = vrot.slane %v1164, 1
    %v1166 = vadd.f32 %v1164, %v1165
    %v1167 = vadd.f32 %v1075, %v1077
    %v1168 = vadd.f32 %v1167, %v1079
    %v1169 = vadd.f32 %v1168, %v1081
    %v1170 = vrot.slane %v1169, 4
    %v1171 = vadd.f32 %v1169, %v1170
    %v1172 = vrot.slane %v1171, 2
    %v1173 = vadd.f32 %v1171, %v1172
    %v1174 = vrot.slane %v1173, 1
    %v1175 = vadd.f32 %v1173, %v1174
    %v1176 = vadd.f32 %v1082, %v1084
    %v1177 = vadd.f32 %v1176, %v1086
    %v1178 = vadd.f32 %v1177, %v1088
    %v1179 = vrot.slane %v1178, 4
    %v1180 = vadd.f32 %v1178, %v1179
    %v1181 = vrot.slane %v1180, 2
    %v1182 = vadd.f32 %v1180, %v1181
    %v1183 = vrot.slane %v1182, 1
    %v1184 = vadd.f32 %v1182, %v1183
    %v1185 = vadd.f32 %v1083, %v1085
    %v1186 = vadd.f32 %v1185, %v1087
    %v1187 = vadd.f32 %v1186, %v1089
    %v1188 = vrot.slane %v1187, 4
    %v1189 = vadd.f32 %v1187, %v1188
    %v1190 = vrot.slane %v1189, 2
    %v1191 = vadd.f32 %v1189, %v1190
    %v1192 = vrot.slane %v1191, 1
    %v1193 = vadd.f32 %v1191, %v1192
    %v1194 = vadd.f32 %v1090, %v1092
    %v1195 = vadd.f32 %v1194, %v1094
    %v1196 = vadd.f32 %v1195, %v1096
    %v1197 = vrot.slane %v1196, 4
    %v1198 = vadd.f32 %v1196, %v1197
    %v1199 = vrot.slane %v1198, 2
    %v1200 = vadd.f32 %v1198, %v1199
    %v1201 = vrot.slane %v1200, 1
    %v1202 = vadd.f32 %v1200, %v1201
    %v1203 = vadd.f32 %v1091, %v1093
    %v1204 = vadd.f32 %v1203, %v1095
    %v1205 = vadd.f32 %v1204, %v1097
    %v1206 = vrot.slane %v1205, 4
    %v1207 = vadd.f32 %v1205, %v1206
    %v1208 = vrot.slane %v1207, 2
    %v1209 = vadd.f32 %v1207, %v1208
    %v1210 = vrot.slane %v1209, 1
    %v1211 = vadd.f32 %v1209, %v1210
    %v1212 = vadd.f32 %v1098, %v1100
    %v1213 = vadd.f32 %v1212, %v1102
    %v1214 = vadd.f32 %v1213, %v1104
    %v1215 = vrot.slane %v1214, 4
    %v1216 = vadd.f32 %v1214, %v1215
    %v1217 = vrot.slane %v1216, 2
    %v1218 = vadd.f32 %v1216, %v1217
    %v1219 = vrot.slane %v1218, 1
    %v1220 = vadd.f32 %v1218, %v1219
    %v1221 = vadd.f32 %v1099, %v1101
    %v1222 = vadd.f32 %v1221, %v1103
    %v1223 = vadd.f32 %v1222, %v1105
    %v1224 = vrot.slane %v1223, 4
    %v1225 = vadd.f32 %v1223, %v1224
    %v1226 = vrot.slane %v1225, 2
    %v1227 = vadd.f32 %v1225, %v1226
    %v1228 = vrot.slane %v1227, 1
    %v1229 = vadd.f32 %v1227, %v1228
    %v1230 = vadd.f32 %v1106, %v1108
    %v1231 = vadd.f32 %v1230, %v1110
    %v1232 = vadd.f32 %v1231, %v1112
    %v1233 = vrot.slane %v1232, 4
    %v1234 = vadd.f32 %v1232, %v1233
    %v1235 = vrot.slane %v1234, 2
    %v1236 = vadd.f32 %v1234, %v1235
    %v1237 = vrot.slane %v1236, 1
    %v1238 = vadd.f32 %v1236, %v1237
    %v1239 = vadd.f32 %v1107, %v1109
    %v1240 = vadd.f32 %v1239, %v1111
    %v1241 = vadd.f32 %v1240, %v1113
    %v1242 = vrot.slane %v1241, 4
    %v1243 = vadd.f32 %v1241, %v1242
    %v1244 = vrot.slane %v1243, 2
    %v1245 = vadd.f32 %v1243, %v1244
    %v1246 = vrot.slane %v1245, 1
    %v1247 = vadd.f32 %v1245, %v1246
    %v1248 = vadd.f32 %v1114, %v1116
    %v1249 = vadd.f32 %v1248, %v1118
    %v1250 = vadd.f32 %v1249, %v1120
    %v1251 = vrot.slane %v1250, 4
    %v1252 = vadd.f32 %v1250, %v1251
    %v1253 = vrot.slane %v1252, 2
    %v1254 = vadd.f32 %v1252, %v1253
    %v1255 = vrot.slane %v1254, 1
    %v1256 = vadd.f32 %v1254, %v1255
    %v1257 = vadd.f32 %v1115, %v1117
    %v1258 = vadd.f32 %v1257, %v1119
    %v1259 = vadd.f32 %v1258, %v1121
    %v1260 = vrot.slane %v1259, 4
    %v1261 = vadd.f32 %v1259, %v1260
    %v1262 = vrot.slane %v1261, 2
    %v1263 = vadd.f32 %v1261, %v1262
    %v1264 = vrot.slane %v1263, 1
    %v1265 = vadd.f32 %v1263, %v1264
    %v1266 = vrcp.pop 32.0
    %v1267 = vmul.f32 %v1130, %v1266
    %v1268 = vmul.f32 %v1139, %v1266
    %v1269 = vmul.f32 %v1148, %v1266
    %v1270 = vmul.f32 %v1157, %v1266
    %v1271 = vmul.f32 %v1166, %v1266
    %v1272 = vmul.f32 %v1175, %v1266
    %v1273 = vmul.f32 %v1184, %v1266
    %v1274 = vmul.f32 %v1193, %v1266
    %v1275 = vmul.f32 %v1202, %v1266
    %v1276 = vmul.f32 %v1211, %v1266
    %v1277 = vmul.f32 %v1220, %v1266
    %v1278 = vmul.f32 %v1229, %v1266
    %v1279 = vmul.f32 %v1238, %v1266
    %v1280 = vmul.f32 %v1247, %v1266
    %v1281 = vmul.f32 %v1256, %v1266
    %v1282 = vmul.f32 %v1265, %v1266
    %v1283 = vmax.f32 %v1058, %v1060
    %v1284 = vmax.f32 %v1283, %v1062
    %v1285 = vmax.f32 %v1284, %v1064
    %v1286 = vrot.slane %v1285, 4
    %v1287 = vmax.f32 %v1285, %v1286
    %v1288 = vrot.slane %v1287, 2
    %v1289 = vmax.f32 %v1287, %v1288
    %v1290 = vrot.slane %v1289, 1
    %v1291 = vmax.f32 %v1289, %v1290
    %v1292 = vmax.f32 %v1059, %v1061
    %v1293 = vmax.f32 %v1292, %v1063
    %v1294 = vmax.f32 %v1293, %v1065
    %v1295 = vrot.slane %v1294, 4
    %v1296 = vmax.f32 %v1294, %v1295
    %v1297 = vrot.slane %v1296, 2
    %v1298 = vmax.f32 %v1296, %v1297
    %v1299 = vrot.slane %v1298, 1
    %v1300 = vmax.f32 %v1298, %v1299
    %v1301 = vmax.f32 %v1066, %v1068
    %v1302 = vmax.f32 %v1301, %v1070
    %v1303 = vmax.f32 %v1302, %v1072
    %v1304 = vrot.slane %v1303, 4
    %v1305 = vmax.f32 %v1303, %v1304
    %v1306 = vrot.slane %v1305, 2
    %v1307 = vmax.f32 %v1305, %v1306
    %v1308 = vrot.slane %v1307, 1
    %v1309 = vmax.f32 %v1307, %v1308
    %v1310 = vmax.f32 %v1067, %v1069
    %v1311 = vmax.f32 %v1310, %v1071
    %v1312 = vmax.f32 %v1311, %v1073
    %v1313 = vrot.slane %v1312, 4
    %v1314 = vmax.f32 %v1312, %v1313
    %v1315 = vrot.slane %v1314, 2
    %v1316 = vmax.f32 %v1314, %v1315
    %v1317 = vrot.slane %v1316, 1
    %v1318 = vmax.f32 %v1316, %v1317
    %v1319 = vmax.f32 %v1074, %v1076
    %v1320 = vmax.f32 %v1319, %v1078
    %v1321 = vmax.f32 %v1320, %v1080
    %v1322 = vrot.slane %v1321, 4
    %v1323 = vmax.f32 %v1321, %v1322
    %v1324 = vrot.slane %v1323, 2
    %v1325 = vmax.f32 %v1323, %v1324
    %v1326 = vrot.slane %v1325, 1
    %v1327 = vmax.f32 %v1325, %v1326
    %v1328 = vmax.f32 %v1075, %v1077
    %v1329 = vmax.f32 %v1328, %v1079
    %v1330 = vmax.f32 %v1329, %v1081
    %v1331 = vrot.slane %v1330, 4
    %v1332 = vmax.f32 %v1330, %v1331
    %v1333 = vrot.slane %v1332, 2
    %v1334 = vmax.f32 %v1332, %v1333
    %v1335 = vrot.slane %v1334, 1
    %v1336 = vmax.f32 %v1334, %v1335
    %v1337 = vmax.f32 %v1082, %v1084
    %v1338 = vmax.f32 %v1337, %v1086
    %v1339 = vmax.f32 %v1338, %v1088
    %v1340 = vrot.slane %v1339, 4
    %v1341 = vmax.f32 %v1339, %v1340
    %v1342 = vrot.slane %v1341, 2
    %v1343 = vmax.f32 %v1341, %v1342
    %v1344 = vrot.slane %v1343, 1
    %v1345 = vmax.f32 %v1343, %v1344
    %v1346 = vmax.f32 %v1083, %v1085
    %v1347 = vmax.f32 %v1346, %v1087
    %v1348 = vmax.f32 %v1347, %v1089
    %v1349 = vrot.slane %v1348, 4
    %v1350 = vmax.f32 %v1348, %v1349
    %v1351 = vrot.slane %v1350, 2
    %v1352 = vmax.f32 %v1350, %v1351
    %v1353 = vrot.slane %v1352, 1
    %v1354 = vmax.f32 %v1352, %v1353
    %v1355 = vmax.f32 %v1090, %v1092
    %v1356 = vmax.f32 %v1355, %v1094
    %v1357 = vmax.f32 %v1356, %v1096
    %v1358 = vrot.slane %v1357, 4
    %v1359 = vmax.f32 %v1357, %v1358
    %v1360 = vrot.slane %v1359, 2
    %v1361 = vmax.f32 %v1359, %v1360
    %v1362 = vrot.slane %v1361, 1
    %v1363 = vmax.f32 %v1361, %v1362
    %v1364 = vmax.f32 %v1091, %v1093
    %v1365 = vmax.f32 %v1364, %v1095
    %v1366 = vmax.f32 %v1365, %v1097
    %v1367 = vrot.slane %v1366, 4
    %v1368 = vmax.f32 %v1366, %v1367
    %v1369 = vrot.slane %v1368, 2
    %v1370 = vmax.f32 %v1368, %v1369
    %v1371 = vrot.slane %v1370, 1
    %v1372 = vmax.f32 %v1370, %v1371
    %v1373 = vmax.f32 %v1098, %v1100
    %v1374 = vmax.f32 %v1373, %v1102
    %v1375 = vmax.f32 %v1374, %v1104
    %v1376 = vrot.slane %v1375, 4
    %v1377 = vmax.f32 %v1375, %v1376
    %v1378 = vrot.slane %v1377, 2
    %v1379 = vmax.f32 %v1377, %v1378
    %v1380 = vrot.slane %v1379, 1
    %v1381 = vmax.f32 %v1379, %v1380
    %v1382 = vmax.f32 %v1099, %v1101
    %v1383 = vmax.f32 %v1382, %v1103
    %v1384 = vmax.f32 %v1383, %v1105
    %v1385 = vrot.slane %v1384, 4
    %v1386 = vmax.f32 %v1384, %v1385
    %v1387 = vrot.slane %v1386, 2
    %v1388 = vmax.f32 %v1386, %v1387
    %v1389 = vrot.slane %v1388, 1
    %v1390 = vmax.f32 %v1388, %v1389
    %v1391 = vmax.f32 %v1106, %v1108
    %v1392 = vmax.f32 %v1391, %v1110
    %v1393 = vmax.f32 %v1392, %v1112
    %v1394 = vrot.slane %v1393, 4
    %v1395 = vmax.f32 %v1393, %v1394
    %v1396 = vrot.slane %v1395, 2
    %v1397 = vmax.f32 %v1395, %v1396
    %v1398 = vrot.slane %v1397, 1
    %v1399 = vmax.f32 %v1397, %v1398
    %v1400 = vmax.f32 %v1107, %v1109
    %v1401 = vmax.f32 %v1400, %v1111
    %v1402 = vmax.f32 %v1401, %v1113
    %v1403 = vrot.slane %v1402, 4
    %v1404 = vmax.f32 %v1402, %v1403
    %v1405 = vrot.slane %v1404, 2
    %v1406 = vmax.f32 %v1404, %v1405
    %v1407 = vrot.slane %v1406, 1
    %v1408 = vmax.f32 %v1406, %v1407
    %v1409 = vmax.f32 %v1114, %v1116
    %v1410 = vmax.f32 %v1409, %v1118
    %v1411 = vmax.f32 %v1410, %v1120
    %v1412 = vrot.slane %v1411, 4
    %v1413 = vmax.f32 %v1411, %v1412
    %v1414 = vrot.slane %v1413, 2
    %v1415 = vmax.f32 %v1413, %v1414
    %v1416 = vrot.slane %v1415, 1
    %v1417 = vmax.f32 %v1415, %v1416
    %v1418 = vmax.f32 %v1115, %v1117
    %v1419 = vmax.f32 %v1418, %v1119
    %v1420 = vmax.f32 %v1419, %v1121
    %v1421 = vrot.slane %v1420, 4
    %v1422 = vmax.f32 %v1420, %v1421
    %v1423 = vrot.slane %v1422, 2
    %v1424 = vmax.f32 %v1422, %v1423
    %v1425 = vrot.slane %v1424, 1
    %v1426 = vmax.f32 %v1424, %v1425
    %v1427 = vld [vmem:[%s4] sm:$0xff]
    %v1428 = vld [vmem:[%s4 + $0x8] sm:$0xff]
    %v1429 = vld [vmem:[%s4 + $0x10] sm:$0x1]
    %v1430 = vld [vmem:[%s4 + $0x18] sm:$0x1]
    %v1447 = vsel %vm529, %v1269, %v1267
    %v1448 = vsel %vm531, %v1271, %v1447
    %v1449 = vsel %vm533, %v1273, %v1448
    %v1450 = vsel %vm535, %v1275, %v1449
    %v1451 = vsel %vm537, %v1277, %v1450
    %v1452 = vsel %vm539, %v1279, %v1451
    %v1453 = vsel %vm541, %v1281, %v1452
    %v1454 = vsel %vm529, %v1270, %v1268
    %v1455 = vsel %vm531, %v1272, %v1454
    %v1456 = vsel %vm533, %v1274, %v1455
    %v1457 = vsel %vm535, %v1276, %v1456
    %v1458 = vsel %vm537, %v1278, %v1457
    %v1459 = vsel %vm539, %v1280, %v1458
    %v1460 = vsel %vm541, %v1282, %v1459
    %1463 = vrot.lane.b32.xlu0 %v1453, 17
    %v1464 = vpop.permute.xlu0 %1463
    %1465 = vrot.lane.b32.xlu0 %v1460, 17
    %v1466 = vpop.permute.xlu0 %1465
    %vm1467 = vcmp.lt.s32.totalorder %v370, 17
    %v1468 = vsel %vm1467, %v1464, %v1466
    %v1469 = vsel %vm1467, %v1466, %v1464
    %v1486 = vsel %vm529, %v1309, %v1291
    %v1487 = vsel %vm531, %v1327, %v1486
    %v1488 = vsel %vm533, %v1345, %v1487
    %v1489 = vsel %vm535, %v1363, %v1488
    %v1490 = vsel %vm537, %v1381, %v1489
    %v1491 = vsel %vm539, %v1399, %v1490
    %v1492 = vsel %vm541, %v1417, %v1491
    %v1493 = vsel %vm529, %v1318, %v1300
    %v1494 = vsel %vm531, %v1336, %v1493
    %v1495 = vsel %vm533, %v1354, %v1494
    %v1496 = vsel %vm535, %v1372, %v1495
    %v1497 = vsel %vm537, %v1390, %v1496
    %v1498 = vsel %vm539, %v1408, %v1497
    %v1499 = vsel %vm541, %v1426, %v1498
    %1502 = vrot.lane.b32.xlu0 %v1492, 17
    %v1503 = vpop.permute.xlu0 %1502
    %1504 = vrot.lane.b32.xlu0 %v1499, 17
    %v1505 = vpop.permute.xlu0 %1504
    %v1506 = vsel %vm1467, %v1503, %v1505
    %v1507 = vsel %vm1467, %v1505, %v1503
    %s1508 = sld [smem:[#allocation6]]
    %v1509 = vstv %s1508
    %v1510 = vmul.f32 %v1509, %v1469
    %v1511 = vmul.f32 %v1509, %v1468
    %s1512 = sld [smem:[#allocation6 + $0x9]]
    %v1513 = vstv %s1512
    %v1514 = vmul.f32 %v1513, %v1507
    %v1515 = vmul.f32 %v1513, %v1506
    %v1516 = vadd.f32 %v1510, %v1514
    %v1517 = vadd.f32 %v1511, %v1515
    %v1518 = vlaneseq
    %v1519 = vshrl.u32 %v1518, 7
    %v1520 = vsub.s32 0, %v1519
    %v1521 = vrot.slane %v1427, %v1520
    %v1522 = vlaneseq
    %v1523 = vshrl.u32 %v1522, 7
    %v1524 = vsub.s32 0, %v1523
    %v1525 = vrot.slane %v1428, %v1524
    %v1526 = vmul.f32 %v1521, %v1516
    %v1527 = vmul.f32 %v1525, %v1517
    %v1528 = vadd.f32 %v1526, 0.0
    %v1529 = vadd.f32 %v1527, 0.0
    %1530 = vrot.lane.b32.xlu0 %v1453, 16
    %v1531 = vpop.permute.xlu0 %1530
    %1532 = vrot.lane.b32.xlu0 %v1460, 16
    %v1533 = vpop.permute.xlu0 %1532
    %vm1534 = vcmp.lt.s32.totalorder %v370, 16
    %v1535 = vsel %vm1534, %v1531, %v1533
    %v1536 = vsel %vm1534, %v1533, %v1531
    %1537 = vrot.lane.b32.xlu0 %v1492, 16
    %v1538 = vpop.permute.xlu0 %1537
    %1539 = vrot.lane.b32.xlu0 %v1499, 16
    %v1540 = vpop.permute.xlu0 %1539
    %v1541 = vsel %vm1534, %v1538, %v1540
    %v1542 = vsel %vm1534, %v1540, %v1538
    %s1543 = sld [smem:[#allocation6 + $0x1]]
    %v1544 = vstv %s1543
    %v1545 = vmul.f32 %v1544, %v1536
    %v1546 = vmul.f32 %v1544, %v1535
    %s1547 = sld [smem:[#allocation6 + $0xa]]
    %v1548 = vstv %s1547
    %v1549 = vmul.f32 %v1548, %v1542
    %v1550 = vmul.f32 %v1548, %v1541
    %v1551 = vadd.f32 %v1545, %v1549
    %v1552 = vadd.f32 %v1546, %v1550
    %v1553 = vlaneseq
    %v1554 = vshrl.u32 %v1553, 7
    %v1555 = vsub.s32 1, %v1554
    %v1556 = vrot.slane %v1427, %v1555
    %v1557 = vlaneseq
    %v1558 = vshrl.u32 %v1557, 7
    %v1559 = vsub.s32 1, %v1558
    %v1560 = vrot.slane %v1428, %v1559
    %v1561 = vmul.f32 %v1556, %v1551
    %v1562 = vmul.f32 %v1560, %v1552
    %v1563 = vadd.f32 %v1528, %v1561
    %v1564 = vadd.f32 %v1529, %v1562
    %1565 = vrot.lane.b32.xlu0 %v1453, 15
    %v1566 = vpop.permute.xlu0 %1565
    %1567 = vrot.lane.b32.xlu0 %v1460, 15
    %v1568 = vpop.permute.xlu0 %1567
    %vm1569 = vcmp.lt.s32.totalorder %v370, 15
    %v1570 = vsel %vm1569, %v1566, %v1568
    %v1571 = vsel %vm1569, %v1568, %v1566
    %1572 = vrot.lane.b32.xlu0 %v1492, 15
    %v1573 = vpop.permute.xlu0 %1572
    %1574 = vrot.lane.b32.xlu0 %v1499, 15
    %v1575 = vpop.permute.xlu0 %1574
    %v1576 = vsel %vm1569, %v1573, %v1575
    %v1577 = vsel %vm1569, %v1575, %v1573
    %s1578 = sld [smem:[#allocation6 + $0x2]]
    %v1579 = vstv %s1578
    %v1580 = vmul.f32 %v1579, %v1571
    %v1581 = vmul.f32 %v1579, %v1570
    %s1582 = sld [smem:[#allocation6 + $0xb]]
    %v1583 = vstv %s1582
    %v1584 = vmul.f32 %v1583, %v1577
    %v1585 = vmul.f32 %v1583, %v1576
    %v1586 = vadd.f32 %v1580, %v1584
    %v1587 = vadd.f32 %v1581, %v1585
    %v1588 = vlaneseq
    %v1589 = vshrl.u32 %v1588, 7
    %v1590 = vsub.s32 2, %v1589
    %v1591 = vrot.slane %v1427, %v1590
    %v1592 = vlaneseq
    %v1593 = vshrl.u32 %v1592, 7
    %v1594 = vsub.s32 2, %v1593
    %v1595 = vrot.slane %v1428, %v1594
    %v1596 = vmul.f32 %v1591, %v1586
    %v1597 = vmul.f32 %v1595, %v1587
    %v1598 = vadd.f32 %v1563, %v1596
    %v1599 = vadd.f32 %v1564, %v1597
    %1600 = vrot.lane.b32.xlu0 %v1453, 1
    %v1601 = vpop.permute.xlu0 %1600
    %1602 = vrot.lane.b32.xlu0 %v1460, 1
    %v1603 = vpop.permute.xlu0 %1602
    %vm1604 = vcmp.lt.s32.totalorder %v370, 1
    %v1605 = vsel %vm1604, %v1601, %v1603
    %v1606 = vsel %vm1604, %v1603, %v1601
    %1607 = vrot.lane.b32.xlu0 %v1492, 1
    %v1608 = vpop.permute.xlu0 %1607
    %1609 = vrot.lane.b32.xlu0 %v1499, 1
    %v1610 = vpop.permute.xlu0 %1609
    %v1611 = vsel %vm1604, %v1608, %v1610
    %v1612 = vsel %vm1604, %v1610, %v1608
    %s1613 = sld [smem:[#allocation6 + $0x3]]
    %v1614 = vstv %s1613
    %v1615 = vmul.f32 %v1614, %v1606
    %v1616 = vmul.f32 %v1614, %v1605
    %s1617 = sld [smem:[#allocation6 + $0xc]]
    %v1618 = vstv %s1617
    %v1619 = vmul.f32 %v1618, %v1612
    %v1620 = vmul.f32 %v1618, %v1611
    %v1621 = vadd.f32 %v1615, %v1619
    %v1622 = vadd.f32 %v1616, %v1620
    %v1623 = vlaneseq
    %v1624 = vshrl.u32 %v1623, 7
    %v1625 = vsub.s32 3, %v1624
    %v1626 = vrot.slane %v1427, %v1625
    %v1627 = vlaneseq
    %v1628 = vshrl.u32 %v1627, 7
    %v1629 = vsub.s32 3, %v1628
    %v1630 = vrot.slane %v1428, %v1629
    %v1631 = vmul.f32 %v1626, %v1621
    %v1632 = vmul.f32 %v1630, %v1622
    %v1633 = vadd.f32 %v1598, %v1631
    %v1634 = vadd.f32 %v1599, %v1632
    %s1635 = sld [smem:[#allocation6 + $0x4]]
    %v1636 = vstv %s1635
    %v1637 = vmul.f32 %v1636, %v1267
    %v1638 = vmul.f32 %v1636, %v1268
    %v1639 = vmul.f32 %v1636, %v1269
    %v1640 = vmul.f32 %v1636, %v1270
    %v1641 = vmul.f32 %v1636, %v1271
    %v1642 = vmul.f32 %v1636, %v1272
    %v1643 = vmul.f32 %v1636, %v1273
    %v1644 = vmul.f32 %v1636, %v1274
    %v1645 = vmul.f32 %v1636, %v1275
    %v1646 = vmul.f32 %v1636, %v1276
    %v1647 = vmul.f32 %v1636, %v1277
    %v1648 = vmul.f32 %v1636, %v1278
    %v1649 = vmul.f32 %v1636, %v1279
    %v1650 = vmul.f32 %v1636, %v1280
    %v1651 = vmul.f32 %v1636, %v1281
    %v1652 = vmul.f32 %v1636, %v1282
    %s1653 = sld [smem:[#allocation6 + $0xd]]
    %v1654 = vstv %s1653
    %v1655 = vmul.f32 %v1654, %v1291
    %v1656 = vmul.f32 %v1654, %v1300
    %v1657 = vmul.f32 %v1654, %v1309
    %v1658 = vmul.f32 %v1654, %v1318
    %v1659 = vmul.f32 %v1654, %v1327
    %v1660 = vmul.f32 %v1654, %v1336
    %v1661 = vmul.f32 %v1654, %v1345
    %v1662 = vmul.f32 %v1654, %v1354
    %v1663 = vmul.f32 %v1654, %v1363
    %v1664 = vmul.f32 %v1654, %v1372
    %v1665 = vmul.f32 %v1654, %v1381
    %v1666 = vmul.f32 %v1654, %v1390
    %v1667 = vmul.f32 %v1654, %v1399
    %v1668 = vmul.f32 %v1654, %v1408
    %v1669 = vmul.f32 %v1654, %v1417
    %v1670 = vmul.f32 %v1654, %v1426
    %v1671 = vadd.f32 %v1637, %v1655
    %v1672 = vadd.f32 %v1638, %v1656
    %v1673 = vadd.f32 %v1639, %v1657
    %v1674 = vadd.f32 %v1640, %v1658
    %v1675 = vadd.f32 %v1641, %v1659
    %v1676 = vadd.f32 %v1642, %v1660
    %v1677 = vadd.f32 %v1643, %v1661
    %v1678 = vadd.f32 %v1644, %v1662
    %v1679 = vadd.f32 %v1645, %v1663
    %v1680 = vadd.f32 %v1646, %v1664
    %v1681 = vadd.f32 %v1647, %v1665
    %v1682 = vadd.f32 %v1648, %v1666
    %v1683 = vadd.f32 %v1649, %v1667
    %v1684 = vadd.f32 %v1650, %v1668
    %v1685 = vadd.f32 %v1651, %v1669
    %v1686 = vadd.f32 %v1652, %v1670
    %v1687 = vlaneseq
    %v1688 = vshrl.u32 %v1687, 7
    %v1689 = vsub.s32 4, %v1688
    %v1690 = vrot.slane %v1427, %v1689
    %v1691 = vlaneseq
    %v1692 = vshrl.u32 %v1691, 7
    %v1693 = vsub.s32 4, %v1692
    %v1694 = vrot.slane %v1428, %v1693
    %v1711 = vsel %vm529, %v1673, %v1671
    %v1712 = vsel %vm531, %v1675, %v1711
    %v1713 = vsel %vm533, %v1677, %v1712
    %v1714 = vsel %vm535, %v1679, %v1713
    %v1715 = vsel %vm537, %v1681, %v1714
    %v1716 = vsel %vm539, %v1683, %v1715
    %v1717 = vsel %vm541, %v1685, %v1716
    %v1718 = vsel %vm529, %v1674, %v1672
    %v1719 = vsel %vm531, %v1676, %v1718
    %v1720 = vsel %vm533, %v1678, %v1719
    %v1721 = vsel %vm535, %v1680, %v1720
    %v1722 = vsel %vm537, %v1682, %v1721
    %v1723 = vsel %vm539, %v1684, %v1722
    %v1724 = vsel %vm541, %v1686, %v1723
    %v1727 = vmul.f32 %v1690, %v1717
    %v1728 = vmul.f32 %v1694, %v1724
    %v1729 = vadd.f32 %v1633, %v1727
    %v1730 = vadd.f32 %v1634, %v1728
    %1731 = vrot.lane.b32.xlu0 %v1453, 127
    %v1732 = vpop.permute.xlu0 %1731
    %1733 = vrot.lane.b32.xlu0 %v1460, 127
    %v1734 = vpop.permute.xlu0 %1733
    %vm1735 = vcmp.lt.s32.totalorder %v370, 127
    %v1736 = vsel %vm1735, %v1732, %v1734
    %v1737 = vsel %vm1735, %v1734, %v1732
    %1738 = vrot.lane.b32.xlu0 %v1492, 127
    %v1739 = vpop.permute.xlu0 %1738
    %1740 = vrot.lane.b32.xlu0 %v1499, 127
    %v1741 = vpop.permute.xlu0 %1740
    %v1742 = vsel %vm1735, %v1739, %v1741
    %v1743 = vsel %vm1735, %v1741, %v1739
    %s1744 = sld [smem:[#allocation6 + $0x5]]
    %v1745 = vstv %s1744
    %v1746 = vmul.f32 %v1745, %v1736
    %v1747 = vmul.f32 %v1745, %v1737
    %s1748 = sld [smem:[#allocation6 + $0xe]]
    %v1749 = vstv %s1748
    %v1750 = vmul.f32 %v1749, %v1742
    %v1751 = vmul.f32 %v1749, %v1743
    %v1752 = vadd.f32 %v1746, %v1750
    %v1753 = vadd.f32 %v1747, %v1751
    %v1754 = vlaneseq
    %v1755 = vshrl.u32 %v1754, 7
    %v1756 = vsub.s32 5, %v1755
    %v1757 = vrot.slane %v1427, %v1756
    %v1758 = vlaneseq
    %v1759 = vshrl.u32 %v1758, 7
    %v1760 = vsub.s32 5, %v1759
    %v1761 = vrot.slane %v1428, %v1760
    %v1762 = vmul.f32 %v1757, %v1752
    %v1763 = vmul.f32 %v1761, %v1753
    %v1764 = vadd.f32 %v1729, %v1762
    %v1765 = vadd.f32 %v1730, %v1763
    %1766 = vrot.lane.b32.xlu0 %v1453, 113
    %v1767 = vpop.permute.xlu0 %1766
    %1768 = vrot.lane.b32.xlu0 %v1460, 113
    %v1769 = vpop.permute.xlu0 %1768
    %vm1770 = vcmp.lt.s32.totalorder %v370, 113
    %v1771 = vsel %vm1770, %v1767, %v1769
    %v1772 = vsel %vm1770, %v1769, %v1767
    %1773 = vrot.lane.b32.xlu0 %v1492, 113
    %v1774 = vpop.permute.xlu0 %1773
    %1775 = vrot.lane.b32.xlu0 %v1499, 113
    %v1776 = vpop.permute.xlu0 %1775
    %v1777 = vsel %vm1770, %v1774, %v1776
    %v1778 = vsel %vm1770, %v1776, %v1774
    %s1779 = sld [smem:[#allocation6 + $0x6]]
    %v1780 = vstv %s1779
    %v1781 = vmul.f32 %v1780, %v1771
    %v1782 = vmul.f32 %v1780, %v1772
    %s1783 = sld [smem:[#allocation6 + $0xf]]
    %v1784 = vstv %s1783
    %v1785 = vmul.f32 %v1784, %v1777
    %v1786 = vmul.f32 %v1784, %v1778
    %v1787 = vadd.f32 %v1781, %v1785
    %v1788 = vadd.f32 %v1782, %v1786
    %v1789 = vlaneseq
    %v1790 = vshrl.u32 %v1789, 7
    %v1791 = vsub.s32 6, %v1790
    %v1792 = vrot.slane %v1427, %v1791
    %v1793 = vlaneseq
    %v1794 = vshrl.u32 %v1793, 7
    %v1795 = vsub.s32 6, %v1794
    %v1796 = vrot.slane %v1428, %v1795
    %v1797 = vmul.f32 %v1792, %v1787
    %v1798 = vmul.f32 %v1796, %v1788
    %v1799 = vadd.f32 %v1764, %v1797
    %v1800 = vadd.f32 %v1765, %v1798
    %1801 = vrot.lane.b32.xlu0 %v1453, 112
    %v1802 = vpop.permute.xlu0 %1801
    %1803 = vrot.lane.b32.xlu0 %v1460, 112
    %v1804 = vpop.permute.xlu0 %1803
    %vm1805 = vcmp.lt.s32.totalorder %v370, 112
    %v1806 = vsel %vm1805, %v1802, %v1804
    %v1807 = vsel %vm1805, %v1804, %v1802
    %1808 = vrot.lane.b32.xlu0 %v1492, 112
    %v1809 = vpop.permute.xlu0 %1808
    %1810 = vrot.lane.b32.xlu0 %v1499, 112
    %v1811 = vpop.permute.xlu0 %1810
    %v1812 = vsel %vm1805, %v1809, %v1811
    %v1813 = vsel %vm1805, %v1811, %v1809
    %s1814 = sld [smem:[#allocation6 + $0x7]]
    %v1815 = vstv %s1814
    %v1816 = vmul.f32 %v1815, %v1806
    %v1817 = vmul.f32 %v1815, %v1807
    %s1818 = sld [smem:[#allocation6 + $0x10]]
    %v1819 = vstv %s1818
    %v1820 = vmul.f32 %v1819, %v1812
    %v1821 = vmul.f32 %v1819, %v1813
    %v1822 = vadd.f32 %v1816, %v1820
    %v1823 = vadd.f32 %v1817, %v1821
    %v1824 = vlaneseq
    %v1825 = vshrl.u32 %v1824, 7
    %v1826 = vsub.s32 7, %v1825
    %v1827 = vrot.slane %v1427, %v1826
    %v1828 = vlaneseq
    %v1829 = vshrl.u32 %v1828, 7
    %v1830 = vsub.s32 7, %v1829
    %v1831 = vrot.slane %v1428, %v1830
    %v1832 = vmul.f32 %v1827, %v1822
    %v1833 = vmul.f32 %v1831, %v1823
    %v1834 = vadd.f32 %v1799, %v1832
    %v1835 = vadd.f32 %v1800, %v1833
    %1836 = vrot.lane.b32.xlu0 %v1453, 111
    %v1837 = vpop.permute.xlu0 %1836
    %1838 = vrot.lane.b32.xlu0 %v1460, 111
    %v1839 = vpop.permute.xlu0 %1838
    %vm1840 = vcmp.lt.s32.totalorder %v370, 111
    %v1841 = vsel %vm1840, %v1837, %v1839
    %v1842 = vsel %vm1840, %v1839, %v1837
    %1843 = vrot.lane.b32.xlu0 %v1492, 111
    %v1844 = vpop.permute.xlu0 %1843
    %1845 = vrot.lane.b32.xlu0 %v1499, 111
    %v1846 = vpop.permute.xlu0 %1845
    %v1847 = vsel %vm1840, %v1844, %v1846
    %v1848 = vsel %vm1840, %v1846, %v1844
    %s1849 = sld [smem:[#allocation6 + $0x8]]
    %v1850 = vstv %s1849
    %v1851 = vmul.f32 %v1850, %v1841
    %v1852 = vmul.f32 %v1850, %v1842
    %s1853 = sld [smem:[#allocation6 + $0x11]]
    %v1854 = vstv %s1853
    %v1855 = vmul.f32 %v1854, %v1847
    %v1856 = vmul.f32 %v1854, %v1848
    %v1857 = vadd.f32 %v1851, %v1855
    %v1858 = vadd.f32 %v1852, %v1856
    %v1859 = vlaneseq
    %v1860 = vshrl.u32 %v1859, 7
    %v1861 = vsub.s32 0, %v1860
    %v1862 = vrot.slane %v1429, %v1861
    %v1863 = vlaneseq
    %v1864 = vshrl.u32 %v1863, 7
    %v1865 = vsub.s32 0, %v1864
    %v1866 = vrot.slane %v1430, %v1865
    %v1867 = vmul.f32 %v1862, %v1857
    %v1868 = vmul.f32 %v1866, %v1858
    %v1869 = vadd.f32 %v1834, %v1867
    %v1870 = vadd.f32 %v1835, %v1868
    %v1871 = vxor.u32 %v1869, 2147483648
    %v1872 = vxor.u32 %v1870, 2147483648
    %v1873 = vmul.f32 %v1871, 1.442695
    %v1874 = vpow.pop %v1873
    %v1875 = vmul.f32 %v1872, 1.442695
    %v1876 = vpow.pop %v1875
    %v1877 = vadd.f32 %v1874, 1.0
    %v1878 = vadd.f32 %v1876, 1.0
    %v1879 = vrcp.pop %v1877
    %v1880 = vmul.f32 1.0, %v1879
    %v1881 = vrcp.pop %v1878
    %v1882 = vmul.f32 1.0, %v1881
    %v1885 = vcombine.low %v1880, %v1882
    %v1886 = vcombine.high %v1880, %v1882
    %v1888 = vunpack.c.l.s4 1966171168
    %v1889 = vunpack.c.0.s8 %v1888
    %v1890 = vlaneseq
    %v1891 = vshrl.u32 %v1890, 7
    %v1892 = vsub.s32 %v1889, %v1891
    %v1893 = vrot.slane %v1885, %v1892
    %v1895 = vunpack.c.l.s4 1966171168
    %v1896 = vunpack.c.0.s8 %v1895
    %v1897 = vlaneseq
    %v1898 = vshrl.u32 %v1897, 7
    %v1899 = vsub.s32 %v1896, %v1898
    %v1900 = vrot.slane %v1886, %v1899
    %v1901 = vcombine.high %v1893, %v1893
    %v1902 = vcombine.high %v1900, %v1900
    %v1904 = vunpack.c.l.s4 1966171168
    %v1905 = vunpack.c.0.s8 %v1904
    %v1906 = vlaneseq
    %v1907 = vshrl.u32 %v1906, 7
    %v1908 = vsub.s32 %v1905, %v1907
    %v1909 = vrot.slane %v1893, %v1908
    %v1911 = vunpack.c.l.s4 1966171168
    %v1912 = vunpack.c.0.s8 %v1911
    %v1913 = vlaneseq
    %v1914 = vshrl.u32 %v1913, 7
    %v1915 = vsub.s32 %v1912, %v1914
    %v1916 = vrot.slane %v1900, %v1915
    %v1918 = vunpack.c.l.s4 1966171168
    %v1919 = vunpack.c.0.s8 %v1918
    %v1920 = vlaneseq
    %v1921 = vshrl.u32 %v1920, 7
    %v1922 = vsub.s32 %v1919, %v1921
    %v1923 = vrot.slane %v1901, %v1922
    %v1925 = vunpack.c.l.s4 1966171168
    %v1926 = vunpack.c.0.s8 %v1925
    %v1927 = vlaneseq
    %v1928 = vshrl.u32 %v1927, 7
    %v1929 = vsub.s32 %v1926, %v1928
    %v1930 = vrot.slane %v1902, %v1929
    %v1931 = vcombine.high %v1909, %v1909
    %v1932 = vcombine.high %v1916, %v1916
    %v1933 = vcombine.high %v1923, %v1923
    %v1934 = vcombine.high %v1930, %v1930
    %v1935 = vlaneseq
    %v1936 = vshrl.u32 %v1935, 7
    %v1937 = vsub.s32 0, %v1936
    %v1938 = vrot.slane %v1909, %v1937
    %v1939 = vlaneseq
    %v1940 = vshrl.u32 %v1939, 7
    %v1941 = vsub.s32 1, %v1940
    %v1942 = vrot.slane %v1909, %v1941
    %v1943 = vlaneseq
    %v1944 = vshrl.u32 %v1943, 7
    %v1945 = vsub.s32 0, %v1944
    %v1946 = vrot.slane %v1923, %v1945
    %v1947 = vlaneseq
    %v1948 = vshrl.u32 %v1947, 7
    %v1949 = vsub.s32 1, %v1948
    %v1950 = vrot.slane %v1923, %v1949
    %v1951 = vlaneseq
    %v1952 = vshrl.u32 %v1951, 7
    %v1953 = vsub.s32 0, %v1952
    %v1954 = vrot.slane %v1931, %v1953
    %v1955 = vlaneseq
    %v1956 = vshrl.u32 %v1955, 7
    %v1957 = vsub.s32 1, %v1956
    %v1958 = vrot.slane %v1931, %v1957
    %v1959 = vlaneseq
    %v1960 = vshrl.u32 %v1959, 7
    %v1961 = vsub.s32 0, %v1960
    %v1962 = vrot.slane %v1933, %v1961
    %v1963 = vlaneseq
    %v1964 = vshrl.u32 %v1963, 7
    %v1965 = vsub.s32 1, %v1964
    %v1966 = vrot.slane %v1933, %v1965
    %v1967 = vlaneseq
    %v1968 = vshrl.u32 %v1967, 7
    %v1969 = vsub.s32 0, %v1968
    %v1970 = vrot.slane %v1916, %v1969
    %v1971 = vlaneseq
    %v1972 = vshrl.u32 %v1971, 7
    %v1973 = vsub.s32 1, %v1972
    %v1974 = vrot.slane %v1916, %v1973
    %v1975 = vlaneseq
    %v1976 = vshrl.u32 %v1975, 7
    %v1977 = vsub.s32 0, %v1976
    %v1978 = vrot.slane %v1930, %v1977
    %v1979 = vlaneseq
    %v1980 = vshrl.u32 %v1979, 7
    %v1981 = vsub.s32 1, %v1980
    %v1982 = vrot.slane %v1930, %v1981
    %v1983 = vlaneseq
    %v1984 = vshrl.u32 %v1983, 7
    %v1985 = vsub.s32 0, %v1984
    %v1986 = vrot.slane %v1932, %v1985
    %v1987 = vlaneseq
    %v1988 = vshrl.u32 %v1987, 7
    %v1989 = vsub.s32 1, %v1988
    %v1990 = vrot.slane %v1932, %v1989
    %v1991 = vlaneseq
    %v1992 = vshrl.u32 %v1991, 7
    %v1993 = vsub.s32 0, %v1992
    %v1994 = vrot.slane %v1934, %v1993
    %v1995 = vlaneseq
    %v1996 = vshrl.u32 %v1995, 7
    %v1997 = vsub.s32 1, %v1996
    %v1998 = vrot.slane %v1934, %v1997
    %v2015 = vmul.f32 %v1058, %v1938
    %v2016 = vmul.f32 %v1059, %v1942
    %v2017 = vmul.f32 %v1060, %v1938
    %v2018 = vmul.f32 %v1061, %v1942
    %v2019 = vmul.f32 %v1062, %v1938
    %v2020 = vmul.f32 %v1063, %v1942
    %v2021 = vmul.f32 %v1064, %v1938
    %v2022 = vmul.f32 %v1065, %v1942
    %v2023 = vmul.f32 %v1066, %v1946
    %v2024 = vmul.f32 %v1067, %v1950
    %v2025 = vmul.f32 %v1068, %v1946
    %v2026 = vmul.f32 %v1069, %v1950
    %v2027 = vmul.f32 %v1070, %v1946
    %v2028 = vmul.f32 %v1071, %v1950
    %v2029 = vmul.f32 %v1072, %v1946
    %v2030 = vmul.f32 %v1073, %v1950
    %v2031 = vmul.f32 %v1074, %v1954
    %v2032 = vmul.f32 %v1075, %v1958
    %v2033 = vmul.f32 %v1076, %v1954
    %v2034 = vmul.f32 %v1077, %v1958
    %v2035 = vmul.f32 %v1078, %v1954
    %v2036 = vmul.f32 %v1079, %v1958
    %v2037 = vmul.f32 %v1080, %v1954
    %v2038 = vmul.f32 %v1081, %v1958
    %v2039 = vmul.f32 %v1082, %v1962
    %v2040 = vmul.f32 %v1083, %v1966
    %v2041 = vmul.f32 %v1084, %v1962
    %v2042 = vmul.f32 %v1085, %v1966
    %v2043 = vmul.f32 %v1086, %v1962
    %v2044 = vmul.f32 %v1087, %v1966
    %v2045 = vmul.f32 %v1088, %v1962
    %v2046 = vmul.f32 %v1089, %v1966
    %v2047 = vmul.f32 %v1090, %v1970
    %v2048 = vmul.f32 %v1091, %v1974
    %v2049 = vmul.f32 %v1092, %v1970
    %v2050 = vmul.f32 %v1093, %v1974
    %v2051 = vmul.f32 %v1094, %v1970
    %v2052 = vmul.f32 %v1095, %v1974
    %v2053 = vmul.f32 %v1096, %v1970
    %v2054 = vmul.f32 %v1097, %v1974
    %v2055 = vmul.f32 %v1098, %v1978
    %v2056 = vmul.f32 %v1099, %v1982
    %v2057 = vmul.f32 %v1100, %v1978
    %v2058 = vmul.f32 %v1101, %v1982
    %v2059 = vmul.f32 %v1102, %v1978
    %v2060 = vmul.f32 %v1103, %v1982
    %v2061 = vmul.f32 %v1104, %v1978
    %v2062 = vmul.f32 %v1105, %v1982
    %v2063 = vmul.f32 %v1106, %v1986
    %v2064 = vmul.f32 %v1107, %v1990
    %v2065 = vmul.f32 %v1108, %v1986
    %v2066 = vmul.f32 %v1109, %v1990
    %v2067 = vmul.f32 %v1110, %v1986
    %v2068 = vmul.f32 %v1111, %v1990
    %v2069 = vmul.f32 %v1112, %v1986
    %v2070 = vmul.f32 %v1113, %v1990
    %v2071 = vmul.f32 %v1114, %v1994
    %v2072 = vmul.f32 %v1115, %v1998
    %v2073 = vmul.f32 %v1116, %v1994
    %v2074 = vmul.f32 %v1117, %v1998
    %v2075 = vmul.f32 %v1118, %v1994
    %v2076 = vmul.f32 %v1119, %v1998
    %v2077 = vmul.f32 %v1120, %v1994
    %v2078 = vmul.f32 %v1121, %v1998
    %2079 = vst [vmem:[#allocation7] sm:$0xff] %v2015
    %2080 = vst [vmem:[#allocation7 + $0x8] sm:$0xff] %v2016
    %2081 = vst [vmem:[#allocation7 + $0x10] sm:$0xff] %v2017
    %2082 = vst [vmem:[#allocation7 + $0x18] sm:$0xff] %v2018
    %2083 = vst [vmem:[#allocation7 + $0x20] sm:$0xff] %v2019
    %2084 = vst [vmem:[#allocation7 + $0x28] sm:$0xff] %v2020
    %2085 = vst [vmem:[#allocation7 + $0x30] sm:$0xff] %v2021
    %2086 = vst [vmem:[#allocation7 + $0x38] sm:$0xff] %v2022
    %2087 = vst [vmem:[#allocation7 + $0x40] sm:$0xff] %v2023
    %2088 = vst [vmem:[#allocation7 + $0x48] sm:$0xff] %v2024
    %2089 = vst [vmem:[#allocation7 + $0x50] sm:$0xff] %v2025
    %2090 = vst [vmem:[#allocation7 + $0x58] sm:$0xff] %v2026
    %2091 = vst [vmem:[#allocation7 + $0x60] sm:$0xff] %v2027
    %2092 = vst [vmem:[#allocation7 + $0x68] sm:$0xff] %v2028
    %2093 = vst [vmem:[#allocation7 + $0x70] sm:$0xff] %v2029
    %2094 = vst [vmem:[#allocation7 + $0x78] sm:$0xff] %v2030
    %2095 = vst [vmem:[#allocation7 + $0x80] sm:$0xff] %v2031
    %2096 = vst [vmem:[#allocation7 + $0x88] sm:$0xff] %v2032
    %2097 = vst [vmem:[#allocation7 + $0x90] sm:$0xff] %v2033
    %2098 = vst [vmem:[#allocation7 + $0x98] sm:$0xff] %v2034
    %2099 = vst [vmem:[#allocation7 + $0xa0] sm:$0xff] %v2035
    %2100 = vst [vmem:[#allocation7 + $0xa8] sm:$0xff] %v2036
    %2101 = vst [vmem:[#allocation7 + $0xb0] sm:$0xff] %v2037
    %2102 = vst [vmem:[#allocation7 + $0xb8] sm:$0xff] %v2038
    %2103 = vst [vmem:[#allocation7 + $0xc0] sm:$0xff] %v2039
    %2104 = vst [vmem:[#allocation7 + $0xc8] sm:$0xff] %v2040
    %2105 = vst [vmem:[#allocation7 + $0xd0] sm:$0xff] %v2041
    %2106 = vst [vmem:[#allocation7 + $0xd8] sm:$0xff] %v2042
    %2107 = vst [vmem:[#allocation7 + $0xe0] sm:$0xff] %v2043
    %2108 = vst [vmem:[#allocation7 + $0xe8] sm:$0xff] %v2044
    %2109 = vst [vmem:[#allocation7 + $0xf0] sm:$0xff] %v2045
    %2110 = vst [vmem:[#allocation7 + $0xf8] sm:$0xff] %v2046
    %2111 = vst [vmem:[#allocation7 + $0x100] sm:$0xff] %v2047
    %2112 = vst [vmem:[#allocation7 + $0x108] sm:$0xff] %v2048
    %2113 = vst [vmem:[#allocation7 + $0x110] sm:$0xff] %v2049
    %2114 = vst [vmem:[#allocation7 + $0x118] sm:$0xff] %v2050
    %2115 = vst [vmem:[#allocation7 + $0x120] sm:$0xff] %v2051
    %2116 = vst [vmem:[#allocation7 + $0x128] sm:$0xff] %v2052
    %2117 = vst [vmem:[#allocation7 + $0x130] sm:$0xff] %v2053
    %2118 = vst [vmem:[#allocation7 + $0x138] sm:$0xff] %v2054
    %2119 = vst [vmem:[#allocation7 + $0x140] sm:$0xff] %v2055
    %2120 = vst [vmem:[#allocation7 + $0x148] sm:$0xff] %v2056
    %2121 = vst [vmem:[#allocation7 + $0x150] sm:$0xff] %v2057
    %2122 = vst [vmem:[#allocation7 + $0x158] sm:$0xff] %v2058
    %2123 = vst [vmem:[#allocation7 + $0x160] sm:$0xff] %v2059
    %2124 = vst [vmem:[#allocation7 + $0x168] sm:$0xff] %v2060
    %2125 = vst [vmem:[#allocation7 + $0x170] sm:$0xff] %v2061
    %2126 = vst [vmem:[#allocation7 + $0x178] sm:$0xff] %v2062
    %2127 = vst [vmem:[#allocation7 + $0x180] sm:$0xff] %v2063
    %2128 = vst [vmem:[#allocation7 + $0x188] sm:$0xff] %v2064
    %2129 = vst [vmem:[#allocation7 + $0x190] sm:$0xff] %v2065
    %2130 = vst [vmem:[#allocation7 + $0x198] sm:$0xff] %v2066
    %2131 = vst [vmem:[#allocation7 + $0x1a0] sm:$0xff] %v2067
    %2132 = vst [vmem:[#allocation7 + $0x1a8] sm:$0xff] %v2068
    %2133 = vst [vmem:[#allocation7 + $0x1b0] sm:$0xff] %v2069
    %2134 = vst [vmem:[#allocation7 + $0x1b8] sm:$0xff] %v2070
    %2135 = vst [vmem:[#allocation7 + $0x1c0] sm:$0xff] %v2071
    %2136 = vst [vmem:[#allocation7 + $0x1c8] sm:$0xff] %v2072
    %2137 = vst [vmem:[#allocation7 + $0x1d0] sm:$0xff] %v2073
    %2138 = vst [vmem:[#allocation7 + $0x1d8] sm:$0xff] %v2074
    %2139 = vst [vmem:[#allocation7 + $0x1e0] sm:$0xff] %v2075
    %2140 = vst [vmem:[#allocation7 + $0x1e8] sm:$0xff] %v2076
    %2141 = vst [vmem:[#allocation7 + $0x1f0] sm:$0xff] %v2077
    %2142 = vst [vmem:[#allocation7 + $0x1f8] sm:$0xff] %v2078
    // Predicated region
    $region30: #{tpu_custom_call.1} parent=1 // pred_check
      _
    $region31: #{tpu_custom_call.1} parent=1 // pred_check_branch
      %2144 = sbr.rel (0) target = $region33
    $region32: #{tpu_custom_call.1} parent=1 // pred_region
      %s2146 = ssub.s32 8192, 8192
      %2147 = vsyncadd [#allocation4], %s2146
      %s2148 = sshll.u32 [#allocation7], 4
      %s2149 = int_to_ptr.vmem [resolvable:$true] %s2148
      %2154 = dma.vmem_to_hbm [thread:$0]  %s2149, 8192, %s5, [#allocation4], 256, 256, 16
    $region33: #{tpu_custom_call.1} parent=1 // pred_fallthru
      _
    // Predicated region
    $region34: #{tpu_custom_call.1} parent=1 // pred_check
      _
    $region35: #{tpu_custom_call.1} parent=1 // pred_check_branch
      %2156 = sbr.rel (0) target = $region37
    $region36: #{tpu_custom_call.1} parent=1 // pred_region
      %2157 = dma.done [#allocation4], 8192
    $region37: #{tpu_custom_call.1} parent=1 // pred_fallthru
      _
    %2158 = vsyncpa [#allocation3], 1
    %2159 = vsyncpa [#allocation4], 1
    %2160 = vsyncpa [#allocation5], 1

</llo_original>
